<compile_context>
chip_gen: v5e
topology: v5e:2x2
jax: 0.10.0
libtpu: 0.0.40
codegen_flags: <defaults>
</compile_context>

<pallas_src>
import math
import functools

import jax
import jax.numpy as jnp
from jax.experimental import pallas as pl
from jax.experimental.pallas import tpu as pltpu


# --------------------------------------------------------------------------- #
# Fused kernel: per-chunk input GEMM + sequential LSTM recurrence             #
# --------------------------------------------------------------------------- #
def _lstm_fused_kernel(x_ref, wih_ref, whh_ref, b_ref, h0_ref, c0_ref,
                       out_ref, cN_ref, h_sc, c_sc, gx_sc, *, t_total, unroll):
    chunk = pl.program_id(1)
    TT, TB, I = x_ref.shape
    H = h_sc.shape[-1]

    @pl.when(chunk == 0)
    def _():
        h_sc[...] = h0_ref[...].astype(jnp.float32)
        c_sc[...] = c0_ref[...].astype(jnp.float32)

    # Chunk input projection: one big GEMM, off the serial h-dependency chain.
    # gates_x = x @ W_ih^T + (b_ih + b_hh), f32 accumulation on the MXU.
    x2d = x_ref[...].reshape(TT * TB, I).astype(wih_ref.dtype)
    gx_sc[...] = (jnp.dot(x2d, wih_ref[...], preferred_element_type=jnp.float32)
                  + b_ref[...])

    whh = whh_ref[...]            # loop-invariant: load once per grid step
    t_base = chunk * TT

    def make_step(masked):
        def step(t, carry):
            h, c = carry
            # Only the recurrent matmul sits on the serial path (bf16 x bf16 -> f32).
            off = pl.multiple_of(t * TB, TB)
            gates = (gx_sc[pl.ds(off, TB), :]
                     + jnp.dot(h.astype(whh.dtype), whh,
                               preferred_element_type=jnp.float32))
            i = jax.nn.sigmoid(gates[:, 0 * H:1 * H])
            f = jax.nn.sigmoid(gates[:, 1 * H:2 * H])
            g = jnp.tanh(gates[:, 2 * H:3 * H])
            o = jax.nn.sigmoid(gates[:, 3 * H:4 * H])
            c_new = f * c + i * g
            h_new = o * jnp.tanh(c_new)
            if masked:
                # Time-padding mask (only ever traced for the last chunk).
                keep = ((t_base + t) < t_total).astype(jnp.float32)
                h_new = keep * h_new + (1.0 - keep) * h
                c_new = keep * c_new + (1.0 - keep) * c
            out_ref[t] = h_new.astype(out_ref.dtype)
            return (h_new, c_new)
        return step

    def run(masked):
        # Partial unroll so the LLO scheduler can overlap the next step's MXU push
        # with the previous step's sigmoid/tanh (EUP) and VPU elementwise work.
        h, c = jax.lax.fori_loop(0, TT, make_step(masked),
                                 (h_sc[...], c_sc[...]), unroll=unroll)
        h_sc[...] = h
        c_sc[...] = c
        return c

    is_last = chunk == pl.num_programs(1) - 1

    if t_total is not None:
        # Time axis is padded: mask only on the last chunk; all other chunks run
        # the unmasked (cheaper) loop body.
        @pl.when(jnp.logical_not(is_last))
        def _():
            run(False)

        @pl.when(is_last)
        def _():
            c = run(True)
            cN_ref[...] = c.astype(cN_ref.dtype)
    else:
        c = run(False)

        @pl.when(is_last)
        def _():
            cN_ref[...] = c.astype(cN_ref.dtype)


# --------------------------------------------------------------------------- #
# Wrapper                                                                     #
# --------------------------------------------------------------------------- #
def _round_up(n, m):
    return ((n + m - 1) // m) * m


@jax.jit
def _lstm_forward_impl(x, w_ih_t, w_hh_t, bias, h0, c0):
    """x: (T, B, I) -> out (T, B, H), hN (B, H) f32, cN (B, H) f32."""
    T, B, I = x.shape
    H = w_hh_t.shape[0]
    G = 4 * H
    out_dtype = x.dtype

    # ---- static layout / tiling choices ----
    TT = min(T, 16)                        # time steps per grid iteration
    T_pad = _round_up(T, TT)

    B8 = _round_up(max(B, 8), 8)           # f32 sublane alignment
    if B8 >= 256:
        TB = 128                           # fixed tile: bounds VMEM, many parallel tiles
        B_pad = _round_up(B8, TB)
    elif B8 >= 16:
        TB = _round_up((B8 + 1) // 2, 8)   # >=2 tiles so v7x can split across its 2 TCs
        B_pad = 2 * TB
    else:
        TB = B8                            # tiny batch: single small tile
        B_pad = B8

    # ---- pad inputs (padded rows/steps are masked / sliced away) ----
    if (T_pad, B_pad) != (T, B):
        x = jnp.pad(x, ((0, T_pad - T), (0, B_pad - B), (0, 0)))
    if B_pad != B:
        h0 = jnp.pad(h0, ((0, B_pad - B), (0, 0)))
        c0 = jnp.pad(c0, ((0, B_pad - B), (0, 0)))

    # ---- explicit VMEM budget (capped for v7x's 64 MiB physical VMEM) ----
    xbytes = x.dtype.itemsize
    wbytes = w_ih_t.dtype.itemsize
    obytes = jnp.dtype(out_dtype).itemsize
    est = (2 * TT * TB * I * xbytes            # x blocks (double buffered)
           + 2 * TT * TB * H * obytes          # out blocks (double buffered)
           + TT * TB * G * 4                   # gx scratch
           + (I * G + H * G) * wbytes + G * 4  # weights + bias
           + 2 * 2 * TB * H * 4                # h0/c0 blocks
           + 2 * TB * H * 4                    # h/c scratch
           + 2 * TB * H * 4)                   # cN output block
    vmem_limit = int(min(max(2 * est, 32 * 1024 * 1024), 64 * 1024 * 1024))

    kernel = functools.partial(
        _lstm_fused_kernel,
        t_total=(T if T_pad != T else None),
        unroll=min(TT, 8))

    out_pad, cN_pad = pl.pallas_call(
        kernel,
        out_shape=(jax.ShapeDtypeStruct((T_pad, B_pad, H), out_dtype),
                   jax.ShapeDtypeStruct((B_pad, H), jnp.float32)),
        grid_spec=pltpu.PrefetchScalarGridSpec(
            num_scalar_prefetch=0,
            grid=(B_pad // TB, T_pad // TT),      # time = innermost serial axis
            in_specs=[pl.BlockSpec((TT, TB, I), lambda b, t: (t, b, 0)),
                      pl.BlockSpec((I, G), lambda b, t: (0, 0)),
                      pl.BlockSpec((H, G), lambda b, t: (0, 0)),
                      pl.BlockSpec((1, G), lambda b, t: (0, 0)),
                      pl.BlockSpec((TB, H), lambda b, t: (b, 0)),
                      pl.BlockSpec((TB, H), lambda b, t: (b, 0))],
            out_specs=[pl.BlockSpec((TT, TB, H), lambda b, t: (t, b, 0)),
                       pl.BlockSpec((TB, H), lambda b, t: (b, 0))],
            scratch_shapes=[pltpu.VMEM((TB, H), jnp.float32),       # h carry
                            pltpu.VMEM((TB, H), jnp.float32),       # c carry
                            pltpu.VMEM((TT * TB, G), jnp.float32)]),  # chunk gates_x
        compiler_params=pltpu.CompilerParams(
            dimension_semantics=("parallel", "arbitrary"),
            vmem_limit_bytes=vmem_limit),
    )(x, w_ih_t, w_hh_t, bias, h0, c0)

    out = out_pad[:T, :B]
    hN = out[T - 1].astype(jnp.float32)    # hN == last output row (no extra output)
    cN = cN_pad[:B]
    return out, hN, cN


# --------------------------------------------------------------------------- #
# Module mirror                                                               #
# --------------------------------------------------------------------------- #
class Memory:
    """JAX/Pallas mirror of the torch Memory module (type='lstm', num_layers=1)."""

    def __init__(self, input_size, type='lstm', num_layers=1, hidden_size=256,
                 key=jax.random.PRNGKey(0), param_dtype=jnp.bfloat16):
        # TODO(synk): GRU and num_layers > 1 not implemented (default path is LSTM, 1 layer).
        assert type.lower() == 'lstm' and num_layers == 1
        self.input_size = input_size
        self.hidden_size = hidden_size
        k = 1.0 / math.sqrt(hidden_size)
        k0, k1, k2, k3 = jax.random.split(key, 4)
        # PyTorch nn.LSTM parameter shapes, uniform(-1/sqrt(H), 1/sqrt(H)) init.
        w_ih = jax.random.uniform(k0, (4 * hidden_size, input_size), jnp.float32, -k, k)
        w_hh = jax.random.uniform(k1, (4 * hidden_size, hidden_size), jnp.float32, -k, k)
        b_ih = jax.random.uniform(k2, (4 * hidden_size,), jnp.float32, -k, k)
        b_hh = jax.random.uniform(k3, (4 * hidden_size,), jnp.float32, -k, k)
        # bf16 weights: half the W_ih/W_hh DMA/VMEM, 2-3x on the serial MXU matmul;
        # f32 accumulation and f32 carried state are kept.
        self.w_ih_t = w_ih.T.astype(param_dtype)
        self.w_hh_t = w_hh.T.astype(param_dtype)
        self.bias = (b_ih + b_hh)[None, :].astype(jnp.float32)
        self.params = (self.w_ih_t, self.w_hh_t, self.bias)
        self.hidden_states = None

    def forward(self, input, masks=None, hidden_states=None):
        batch_mode = masks is not None
        if batch_mode:
            if hidden_states is None:
                raise ValueError('Hidden states not passed to memory module during policy update')
            h0, c0 = hidden_states   # each (num_layers=1, B, H)
            out, _, _ = _lstm_forward_impl(input, self.w_ih_t, self.w_hh_t,
                                           self.bias, h0[0], c0[0])
            # TODO(synk): unpad_trajectories is defined elsewhere in nav_gym; returning padded out.
            return out
        else:
            B = input.shape[0]
            if self.hidden_states is None:
                h0 = jnp.zeros((B, self.hidden_size), jnp.float32)
                c0 = jnp.zeros((B, self.hidden_size), jnp.float32)
            else:
                h0, c0 = self.hidden_states
            out, hN, cN = _lstm_forward_impl(input[None, ...], self.w_ih_t,
                                             self.w_hh_t, self.bias, h0, c0)
            self.hidden_states = (hN, cN)   # kept in f32 for the next step
            return out   # shape (1, B, H), matching torch (seq=1 kept)

    def reset(self, dones=None):
        if self.hidden_states is None:
            return
        h, c = self.hidden_states
        if dones is None:
            self.hidden_states = (jnp.zeros_like(h), jnp.zeros_like(c))
        else:
            self.hidden_states = (h.at[dones, :].set(0.0), c.at[dones, :].set(0.0))


# --------------------------------------------------------------------------- #
# Pure-JAX reference (PyTorch LSTM semantics, gate order i, f, g, o).         #
# Mirrors the kernel's bf16 matmuls with f32 accumulation for tight checking. #
# --------------------------------------------------------------------------- #
def _lstm_ref(x, params, h0, c0):
    w_ih_t, w_hh_t, bias = params
    H = w_hh_t.shape[0]
    wd = w_ih_t.dtype

    def step(carry, xt):
        h, c = carry
        gates = (jnp.dot(xt.astype(wd), w_ih_t, preferred_element_type=jnp.float32)
                 + jnp.dot(h.astype(wd), w_hh_t, preferred_element_type=jnp.float32)
                 + bias)
        i = jax.nn.sigmoid(gates[:, 0 * H:1 * H])
        f = jax.nn.sigmoid(gates[:, 1 * H:2 * H])
        g = jnp.tanh(gates[:, 2 * H:3 * H])
        o = jax.nn.sigmoid(gates[:, 3 * H:4 * H])
        c = f * c + i * g
        h = o * jnp.tanh(c)
        return (h, c), h

    (_, _), out = jax.lax.scan(step, (h0, c0), x)
    return out


if __name__ == "__main__":
    T, B, I, H = 8, 8, 32, 128   # H a multiple of 128 keeps gate slices lane-aligned
    TOL = dict(atol=2e-2, rtol=2e-2)   # bf16 weights / bf16 recurrent matmul

    mem = Memory(input_size=I, hidden_size=H, key=jax.random.PRNGKey(0))

    kx, kh, kc = jax.random.split(jax.random.PRNGKey(1), 3)
    x_seq = jax.random.normal(kx, (T, B, I), jnp.float32)
    h0 = jax.random.normal(kh, (1, B, H), jnp.float32)
    c0 = jax.random.normal(kc, (1, B, H), jnp.float32)
    masks = jnp.ones((T, B), jnp.float32)   # only used to select batch mode here

    # "Policy update" style sequence pass (single time chunk, single batch tile).
    out_seq = jax.block_until_ready(
        mem.forward(x_seq, masks=masks, hidden_states=(h0, c0)))
    ref_seq = _lstm_ref(x_seq, mem.params, h0[0], c0[0])
    assert out_seq.shape == (T, B, H)
    assert jnp.allclose(out_seq, ref_seq, **TOL)

    # Ragged shapes: multi time chunk (TT=16, T_pad=32, masked last chunk) and
    # multi batch tile (B=20 -> TB=16, B_pad=32, two "parallel" tiles).
    T2, B2 = 20, 20
    x2 = jax.random.normal(jax.random.PRNGKey(2), (T2, B2, I), jnp.float32)
    h02 = jnp.zeros((1, B2, H), jnp.float32)
    c02 = jnp.zeros((1, B2, H), jnp.float32)
    out2 = jax.block_until_ready(
        mem.forward(x2, masks=jnp.ones((T2, B2)), hidden_states=(h02, c02)))
    ref2 = _lstm_ref(x2, mem.params, h02[0], c02[0])
    assert out2.shape == (T2, B2, H)
    assert jnp.allclose(out2, ref2, **TOL)

    # Inference mode: single step, persistent hidden state, same fused kernel.
    out_step = jax.block_until_ready(mem.forward(x_seq[0]))
    assert out_step.shape == (1, B, H)
    out_step2 = jax.block_until_ready(mem.forward(x_seq[1]))
    ref_steps = _lstm_ref(x_seq[:2], mem.params,
                          jnp.zeros((B, H), jnp.float32),
                          jnp.zeros((B, H), jnp.float32))
    assert jnp.allclose(out_step[0], ref_steps[0], **TOL)
    assert jnp.allclose(out_step2[0], ref_steps[1], **TOL)

    mem.reset(dones=jnp.array([0, 3]))
    mem.reset()

    print("KERNEL_OK")
</pallas_src>

<mosaic_0001>
module attributes {stable_mosaic.version = 11 : i64} {
  func.func @_lstm_fused_kernel(%arg0: i32, %arg1: i32, %arg2: memref<8x8x32xf32, #tpu.memory_space<vmem>>, %arg3: memref<32x512xbf16, #tpu.memory_space<vmem>>, %arg4: memref<128x512xbf16, #tpu.memory_space<vmem>>, %arg5: memref<1x512xf32, #tpu.memory_space<vmem>>, %arg6: memref<8x128xf32, #tpu.memory_space<vmem>>, %arg7: memref<8x128xf32, #tpu.memory_space<vmem>>, %arg8: memref<8x8x128xf32, #tpu.memory_space<vmem>>, %arg9: memref<8x128xf32, #tpu.memory_space<vmem>>, %arg10: memref<8x128xf32, #tpu.memory_space<vmem>>, %arg11: memref<8x128xf32, #tpu.memory_space<vmem>>, %arg12: memref<64x512xf32, #tpu.memory_space<vmem>>) attributes {dimension_semantics = [#tpu.dimension_semantics<parallel>, #tpu.dimension_semantics<arbitrary>], iteration_bounds = array<i64: 1, 1>, scalar_prefetch = 0 : i64, scratch_operands = 3 : i64, tpu.core_type = #tpu.core_type<tc>, window_params = [{transform_indices = @transform_0, window_bounds = array<i64: 8, 8, 32>}, {pipeline_mode = #tpu.pipeline_mode<synchronous>, transform_indices = @transform_1, window_bounds = array<i64: 32, 512>}, {pipeline_mode = #tpu.pipeline_mode<synchronous>, transform_indices = @transform_2, window_bounds = array<i64: 128, 512>}, {pipeline_mode = #tpu.pipeline_mode<synchronous>, transform_indices = @transform_3, window_bounds = array<i64: 1, 512>}, {transform_indices = @transform_4, window_bounds = array<i64: 8, 128>}, {transform_indices = @transform_5, window_bounds = array<i64: 8, 128>}, {transform_indices = @transform_6, window_bounds = array<i64: 8, 8, 128>}, {transform_indices = @transform_7, window_bounds = array<i64: 8, 128>}]} {
    %c0_i32 = arith.constant 0 : i32
    %0 = arith.cmpi eq, %arg1, %c0_i32 : i32
    %1 = arith.extui %0 : i1 to i32
    %c0_i32_0 = arith.constant 0 : i32
    %2 = arith.cmpi ne, %1, %c0_i32_0 : i32
    scf.if %2 {
      %c0_86 = arith.constant 0 : index
      %c0_87 = arith.constant 0 : index
      %308 = vector.load %arg6[%c0_86, %c0_87] : memref<8x128xf32, #tpu.memory_space<vmem>>, vector<8x128xf32>
      %c0_88 = arith.constant 0 : index
      %c0_89 = arith.constant 0 : index
      %309 = vector.load %arg10[%c0_88, %c0_89] : memref<8x128xf32, #tpu.memory_space<vmem>>, vector<8x128xf32>
      tpu.vector_store %arg10[%c0_88, %c0_89], %308 {strides = array<i32>} : memref<8x128xf32, #tpu.memory_space<vmem>>, vector<8x128xf32>,
      %c0_90 = arith.constant 0 : index
      %c0_91 = arith.constant 0 : index
      %310 = vector.load %arg7[%c0_90, %c0_91] : memref<8x128xf32, #tpu.memory_space<vmem>>, vector<8x128xf32>
      %c0_92 = arith.constant 0 : index
      %c0_93 = arith.constant 0 : index
      %311 = vector.load %arg11[%c0_92, %c0_93] : memref<8x128xf32, #tpu.memory_space<vmem>>, vector<8x128xf32>
      tpu.vector_store %arg11[%c0_92, %c0_93], %310 {strides = array<i32>} : memref<8x128xf32, #tpu.memory_space<vmem>>, vector<8x128xf32>,
    } else {
    }
    %c0 = arith.constant 0 : index
    %c0_1 = arith.constant 0 : index
    %c0_2 = arith.constant 0 : index
    %3 = vector.load %arg2[%c0, %c0_1, %c0_2] : memref<8x8x32xf32, #tpu.memory_space<vmem>>, vector<8x8x32xf32>
    %4 = vector.shape_cast %3 : vector<8x8x32xf32> to vector<64x32xf32>
    %5 = arith.truncf %4 : vector<64x32xf32> to vector<64x32xbf16>
    %c0_3 = arith.constant 0 : index
    %c0_4 = arith.constant 0 : index
    %6 = vector.load %arg3[%c0_3, %c0_4] : memref<32x512xbf16, #tpu.memory_space<vmem>>, vector<32x512xbf16>
    %cst = arith.constant dense<0.000000e+00> : vector<64x512xf32>
    %7 = tpu.matmul %5, %6, %cst {dimension_numbers = #tpu.dot_dimension_numbers<[1], [0], [0], [1], [0, 0, 1, 1], [], []>} : vector<64x32xbf16>, vector<32x512xbf16>, vector<64x512xf32> -> vector<64x512xf32>
    %c0_5 = arith.constant 0 : index
    %c0_6 = arith.constant 0 : index
    %8 = vector.load %arg5[%c0_5, %c0_6] : memref<1x512xf32, #tpu.memory_space<vmem>>, vector<1x512xf32>
    %9 = vector.broadcast %8 : vector<1x512xf32> to vector<64x512xf32>
    %10 = arith.addf %7, %9 : vector<64x512xf32>
    %c0_7 = arith.constant 0 : index
    %c0_8 = arith.constant 0 : index
    %11 = vector.load %arg12[%c0_7, %c0_8] : memref<64x512xf32, #tpu.memory_space<vmem>>, vector<64x512xf32>
    tpu.vector_store %arg12[%c0_7, %c0_8], %10 {strides = array<i32>} : memref<64x512xf32, #tpu.memory_space<vmem>>, vector<64x512xf32>,
    %c0_9 = arith.constant 0 : index
    %c0_10 = arith.constant 0 : index
    %12 = vector.load %arg4[%c0_9, %c0_10] : memref<128x512xbf16, #tpu.memory_space<vmem>>, vector<128x512xbf16>
    %c0_i32_11 = arith.constant 0 : i32
    %13 = arith.cmpi eq, %arg1, %c0_i32_11 : i32
    %c0_12 = arith.constant 0 : index
    %c0_13 = arith.constant 0 : index
    %14 = vector.load %arg10[%c0_12, %c0_13] : memref<8x128xf32, #tpu.memory_space<vmem>>, vector<8x128xf32>
    %c0_14 = arith.constant 0 : index
    %c0_15 = arith.constant 0 : index
    %15 = vector.load %arg11[%c0_14, %c0_15] : memref<8x128xf32, #tpu.memory_space<vmem>>, vector<8x128xf32>
    %c0_i32_16 = arith.constant 0 : i32
    %c8_i32 = arith.constant 8 : i32
    %16 = arith.muli %c0_i32_16, %c8_i32 : i32
    %17 = tpu.assume_multiple %16, 8 : i32
    %18 = arith.index_cast %17 : i32 to index
    %c0_17 = arith.constant 0 : index
    %19 = vector.load %arg12[%18, %c0_17] : memref<64x512xf32, #tpu.memory_space<vmem>>, vector<8x512xf32>
    %20 = arith.truncf %14 : vector<8x128xf32> to vector<8x128xbf16>
    %cst_18 = arith.constant dense<0.000000e+00> : vector<8x512xf32>
    %21 = tpu.matmul %20, %12, %cst_18 {dimension_numbers = #tpu.dot_dimension_numbers<[1], [0], [0], [1], [0, 0, 1, 1], [], []>} : vector<8x128xbf16>, vector<128x512xbf16>, vector<8x512xf32> -> vector<8x512xf32>
    %22 = arith.addf %19, %21 : vector<8x512xf32>
    %23 = vector.extract_strided_slice %22 {offsets = [0, 0], sizes = [8, 128], strides = [1, 1]} : vector<8x512xf32> to vector<8x128xf32>
    %24 = arith.negf %23 : vector<8x128xf32>
    %25 = math.exp %24 : vector<8x128xf32>
    %cst_19 = arith.constant 1.000000e+00 : f32
    %26 = vector.broadcast %cst_19 : f32 to vector<8x128xf32>
    %27 = arith.addf %26, %25 : vector<8x128xf32>
    %28 = arith.divf %26, %27 : vector<8x128xf32>
    %29 = vector.extract_strided_slice %22 {offsets = [0, 128], sizes = [8, 128], strides = [1, 1]} : vector<8x512xf32> to vector<8x128xf32>
    %30 = arith.negf %29 : vector<8x128xf32>
    %31 = math.exp %30 : vector<8x128xf32>
    %cst_20 = arith.constant 1.000000e+00 : f32
    %32 = vector.broadcast %cst_20 : f32 to vector<8x128xf32>
    %33 = arith.addf %32, %31 : vector<8x128xf32>
    %34 = arith.divf %32, %33 : vector<8x128xf32>
    %35 = vector.extract_strided_slice %22 {offsets = [0, 256], sizes = [8, 128], strides = [1, 1]} : vector<8x512xf32> to vector<8x128xf32>
    %36 = math.tanh %35 : vector<8x128xf32>
    %37 = vector.extract_strided_slice %22 {offsets = [0, 384], sizes = [8, 128], strides = [1, 1]} : vector<8x512xf32> to vector<8x128xf32>
    %38 = arith.negf %37 : vector<8x128xf32>
    %39 = math.exp %38 : vector<8x128xf32>
    %cst_21 = arith.constant 1.000000e+00 : f32
    %40 = vector.broadcast %cst_21 : f32 to vector<8x128xf32>
    %41 = arith.addf %40, %39 : vector<8x128xf32>
    %42 = arith.divf %40, %41 : vector<8x128xf32>
    %43 = arith.mulf %34, %15 : vector<8x128xf32>
    %44 = arith.mulf %28, %36 : vector<8x128xf32>
    %45 = arith.addf %43, %44 : vector<8x128xf32>
    %46 = math.tanh %45 : vector<8x128xf32>
    %47 = arith.mulf %42, %46 : vector<8x128xf32>
    %48 = arith.index_cast %c0_i32_16 : i32 to index
    %c0_22 = arith.constant 0 : index
    %c0_23 = arith.constant 0 : index
    %49 = vector.load %arg8[%48, %c0_22, %c0_23] : memref<8x8x128xf32, #tpu.memory_space<vmem>>, vector<1x8x128xf32>
    %50 = vector.shape_cast %49 : vector<1x8x128xf32> to vector<8x128xf32>
    %51 = vector.shape_cast %47 : vector<8x128xf32> to vector<1x8x128xf32>
    tpu.vector_store %arg8[%48, %c0_22, %c0_23], %51 {strides = array<i32>} : memref<8x8x128xf32, #tpu.memory_space<vmem>>, vector<1x8x128xf32>,
    %c1_i32 = arith.constant 1 : i32
    %c8_i32_24 = arith.constant 8 : i32
    %52 = arith.muli %c1_i32, %c8_i32_24 : i32
    %53 = tpu.assume_multiple %52, 8 : i32
    %54 = arith.index_cast %53 : i32 to index
    %c0_25 = arith.constant 0 : index
    %55 = vector.load %arg12[%54, %c0_25] : memref<64x512xf32, #tpu.memory_space<vmem>>, vector<8x512xf32>
    %56 = arith.truncf %47 : vector<8x128xf32> to vector<8x128xbf16>
    %cst_26 = arith.constant dense<0.000000e+00> : vector<8x512xf32>
    %57 = tpu.matmul %56, %12, %cst_26 {dimension_numbers = #tpu.dot_dimension_numbers<[1], [0], [0], [1], [0, 0, 1, 1], [], []>} : vector<8x128xbf16>, vector<128x512xbf16>, vector<8x512xf32> -> vector<8x512xf32>
    %58 = arith.addf %55, %57 : vector<8x512xf32>
    %59 = vector.extract_strided_slice %58 {offsets = [0, 0], sizes = [8, 128], strides = [1, 1]} : vector<8x512xf32> to vector<8x128xf32>
    %60 = arith.negf %59 : vector<8x128xf32>
    %61 = math.exp %60 : vector<8x128xf32>
    %cst_27 = arith.constant 1.000000e+00 : f32
    %62 = vector.broadcast %cst_27 : f32 to vector<8x128xf32>
    %63 = arith.addf %62, %61 : vector<8x128xf32>
    %64 = arith.divf %62, %63 : vector<8x128xf32>
    %65 = vector.extract_strided_slice %58 {offsets = [0, 128], sizes = [8, 128], strides = [1, 1]} : vector<8x512xf32> to vector<8x128xf32>
    %66 = arith.negf %65 : vector<8x128xf32>
    %67 = math.exp %66 : vector<8x128xf32>
    %cst_28 = arith.constant 1.000000e+00 : f32
    %68 = vector.broadcast %cst_28 : f32 to vector<8x128xf32>
    %69 = arith.addf %68, %67 : vector<8x128xf32>
    %70 = arith.divf %68, %69 : vector<8x128xf32>
    %71 = vector.extract_strided_slice %58 {offsets = [0, 256], sizes = [8, 128], strides = [1, 1]} : vector<8x512xf32> to vector<8x128xf32>
    %72 = math.tanh %71 : vector<8x128xf32>
    %73 = vector.extract_strided_slice %58 {offsets = [0, 384], sizes = [8, 128], strides = [1, 1]} : vector<8x512xf32> to vector<8x128xf32>
    %74 = arith.negf %73 : vector<8x128xf32>
    %75 = math.exp %74 : vector<8x128xf32>
    %cst_29 = arith.constant 1.000000e+00 : f32
    %76 = vector.broadcast %cst_29 : f32 to vector<8x128xf32>
    %77 = arith.addf %76, %75 : vector<8x128xf32>
    %78 = arith.divf %76, %77 : vector<8x128xf32>
    %79 = arith.mulf %70, %45 : vector<8x128xf32>
    %80 = arith.mulf %64, %72 : vector<8x128xf32>
    %81 = arith.addf %79, %80 : vector<8x128xf32>
    %82 = math.tanh %81 : vector<8x128xf32>
    %83 = arith.mulf %78, %82 : vector<8x128xf32>
    %84 = arith.index_cast %c1_i32 : i32 to index
    %c0_30 = arith.constant 0 : index
    %c0_31 = arith.constant 0 : index
    %85 = vector.load %arg8[%84, %c0_30, %c0_31] : memref<8x8x128xf32, #tpu.memory_space<vmem>>, vector<1x8x128xf32>
    %86 = vector.shape_cast %85 : vector<1x8x128xf32> to vector<8x128xf32>
    %87 = vector.shape_cast %83 : vector<8x128xf32> to vector<1x8x128xf32>
    tpu.vector_store %arg8[%84, %c0_30, %c0_31], %87 {strides = array<i32>} : memref<8x8x128xf32, #tpu.memory_space<vmem>>, vector<1x8x128xf32>,
    %c2_i32 = arith.constant 2 : i32
    %c8_i32_32 = arith.constant 8 : i32
    %88 = arith.muli %c2_i32, %c8_i32_32 : i32
    %89 = tpu.assume_multiple %88, 8 : i32
    %90 = arith.index_cast %89 : i32 to index
    %c0_33 = arith.constant 0 : index
    %91 = vector.load %arg12[%90, %c0_33] : memref<64x512xf32, #tpu.memory_space<vmem>>, vector<8x512xf32>
    %92 = arith.truncf %83 : vector<8x128xf32> to vector<8x128xbf16>
    %cst_34 = arith.constant dense<0.000000e+00> : vector<8x512xf32>
    %93 = tpu.matmul %92, %12, %cst_34 {dimension_numbers = #tpu.dot_dimension_numbers<[1], [0], [0], [1], [0, 0, 1, 1], [], []>} : vector<8x128xbf16>, vector<128x512xbf16>, vector<8x512xf32> -> vector<8x512xf32>
    %94 = arith.addf %91, %93 : vector<8x512xf32>
    %95 = vector.extract_strided_slice %94 {offsets = [0, 0], sizes = [8, 128], strides = [1, 1]} : vector<8x512xf32> to vector<8x128xf32>
    %96 = arith.negf %95 : vector<8x128xf32>
    %97 = math.exp %96 : vector<8x128xf32>
    %cst_35 = arith.constant 1.000000e+00 : f32
    %98 = vector.broadcast %cst_35 : f32 to vector<8x128xf32>
    %99 = arith.addf %98, %97 : vector<8x128xf32>
    %100 = arith.divf %98, %99 : vector<8x128xf32>
    %101 = vector.extract_strided_slice %94 {offsets = [0, 128], sizes = [8, 128], strides = [1, 1]} : vector<8x512xf32> to vector<8x128xf32>
    %102 = arith.negf %101 : vector<8x128xf32>
    %103 = math.exp %102 : vector<8x128xf32>
    %cst_36 = arith.constant 1.000000e+00 : f32
    %104 = vector.broadcast %cst_36 : f32 to vector<8x128xf32>
    %105 = arith.addf %104, %103 : vector<8x128xf32>
    %106 = arith.divf %104, %105 : vector<8x128xf32>
    %107 = vector.extract_strided_slice %94 {offsets = [0, 256], sizes = [8, 128], strides = [1, 1]} : vector<8x512xf32> to vector<8x128xf32>
    %108 = math.tanh %107 : vector<8x128xf32>
    %109 = vector.extract_strided_slice %94 {offsets = [0, 384], sizes = [8, 128], strides = [1, 1]} : vector<8x512xf32> to vector<8x128xf32>
    %110 = arith.negf %109 : vector<8x128xf32>
    %111 = math.exp %110 : vector<8x128xf32>
    %cst_37 = arith.constant 1.000000e+00 : f32
    %112 = vector.broadcast %cst_37 : f32 to vector<8x128xf32>
    %113 = arith.addf %112, %111 : vector<8x128xf32>
    %114 = arith.divf %112, %113 : vector<8x128xf32>
    %115 = arith.mulf %106, %81 : vector<8x128xf32>
    %116 = arith.mulf %100, %108 : vector<8x128xf32>
    %117 = arith.addf %115, %116 : vector<8x128xf32>
    %118 = math.tanh %117 : vector<8x128xf32>
    %119 = arith.mulf %114, %118 : vector<8x128xf32>
    %120 = arith.index_cast %c2_i32 : i32 to index
    %c0_38 = arith.constant 0 : index
    %c0_39 = arith.constant 0 : index
    %121 = vector.load %arg8[%120, %c0_38, %c0_39] : memref<8x8x128xf32, #tpu.memory_space<vmem>>, vector<1x8x128xf32>
    %122 = vector.shape_cast %121 : vector<1x8x128xf32> to vector<8x128xf32>
    %123 = vector.shape_cast %119 : vector<8x128xf32> to vector<1x8x128xf32>
    tpu.vector_store %arg8[%120, %c0_38, %c0_39], %123 {strides = array<i32>} : memref<8x8x128xf32, #tpu.memory_space<vmem>>, vector<1x8x128xf32>,
    %c3_i32 = arith.constant 3 : i32
    %c8_i32_40 = arith.constant 8 : i32
    %124 = arith.muli %c3_i32, %c8_i32_40 : i32
    %125 = tpu.assume_multiple %124, 8 : i32
    %126 = arith.index_cast %125 : i32 to index
    %c0_41 = arith.constant 0 : index
    %127 = vector.load %arg12[%126, %c0_41] : memref<64x512xf32, #tpu.memory_space<vmem>>, vector<8x512xf32>
    %128 = arith.truncf %119 : vector<8x128xf32> to vector<8x128xbf16>
    %cst_42 = arith.constant dense<0.000000e+00> : vector<8x512xf32>
    %129 = tpu.matmul %128, %12, %cst_42 {dimension_numbers = #tpu.dot_dimension_numbers<[1], [0], [0], [1], [0, 0, 1, 1], [], []>} : vector<8x128xbf16>, vector<128x512xbf16>, vector<8x512xf32> -> vector<8x512xf32>
    %130 = arith.addf %127, %129 : vector<8x512xf32>
    %131 = vector.extract_strided_slice %130 {offsets = [0, 0], sizes = [8, 128], strides = [1, 1]} : vector<8x512xf32> to vector<8x128xf32>
    %132 = arith.negf %131 : vector<8x128xf32>
    %133 = math.exp %132 : vector<8x128xf32>
    %cst_43 = arith.constant 1.000000e+00 : f32
    %134 = vector.broadcast %cst_43 : f32 to vector<8x128xf32>
    %135 = arith.addf %134, %133 : vector<8x128xf32>
    %136 = arith.divf %134, %135 : vector<8x128xf32>
    %137 = vector.extract_strided_slice %130 {offsets = [0, 128], sizes = [8, 128], strides = [1, 1]} : vector<8x512xf32> to vector<8x128xf32>
    %138 = arith.negf %137 : vector<8x128xf32>
    %139 = math.exp %138 : vector<8x128xf32>
    %cst_44 = arith.constant 1.000000e+00 : f32
    %140 = vector.broadcast %cst_44 : f32 to vector<8x128xf32>
    %141 = arith.addf %140, %139 : vector<8x128xf32>
    %142 = arith.divf %140, %141 : vector<8x128xf32>
    %143 = vector.extract_strided_slice %130 {offsets = [0, 256], sizes = [8, 128], strides = [1, 1]} : vector<8x512xf32> to vector<8x128xf32>
    %144 = math.tanh %143 : vector<8x128xf32>
    %145 = vector.extract_strided_slice %130 {offsets = [0, 384], sizes = [8, 128], strides = [1, 1]} : vector<8x512xf32> to vector<8x128xf32>
    %146 = arith.negf %145 : vector<8x128xf32>
    %147 = math.exp %146 : vector<8x128xf32>
    %cst_45 = arith.constant 1.000000e+00 : f32
    %148 = vector.broadcast %cst_45 : f32 to vector<8x128xf32>
    %149 = arith.addf %148, %147 : vector<8x128xf32>
    %150 = arith.divf %148, %149 : vector<8x128xf32>
    %151 = arith.mulf %142, %117 : vector<8x128xf32>
    %152 = arith.mulf %136, %144 : vector<8x128xf32>
    %153 = arith.addf %151, %152 : vector<8x128xf32>
    %154 = math.tanh %153 : vector<8x128xf32>
    %155 = arith.mulf %150, %154 : vector<8x128xf32>
    %156 = arith.index_cast %c3_i32 : i32 to index
    %c0_46 = arith.constant 0 : index
    %c0_47 = arith.constant 0 : index
    %157 = vector.load %arg8[%156, %c0_46, %c0_47] : memref<8x8x128xf32, #tpu.memory_space<vmem>>, vector<1x8x128xf32>
    %158 = vector.shape_cast %157 : vector<1x8x128xf32> to vector<8x128xf32>
    %159 = vector.shape_cast %155 : vector<8x128xf32> to vector<1x8x128xf32>
    tpu.vector_store %arg8[%156, %c0_46, %c0_47], %159 {strides = array<i32>} : memref<8x8x128xf32, #tpu.memory_space<vmem>>, vector<1x8x128xf32>,
    %c4_i32 = arith.constant 4 : i32
    %c8_i32_48 = arith.constant 8 : i32
    %160 = arith.muli %c4_i32, %c8_i32_48 : i32
    %161 = tpu.assume_multiple %160, 8 : i32
    %162 = arith.index_cast %161 : i32 to index
    %c0_49 = arith.constant 0 : index
    %163 = vector.load %arg12[%162, %c0_49] : memref<64x512xf32, #tpu.memory_space<vmem>>, vector<8x512xf32>
    %164 = arith.truncf %155 : vector<8x128xf32> to vector<8x128xbf16>
    %cst_50 = arith.constant dense<0.000000e+00> : vector<8x512xf32>
    %165 = tpu.matmul %164, %12, %cst_50 {dimension_numbers = #tpu.dot_dimension_numbers<[1], [0], [0], [1], [0, 0, 1, 1], [], []>} : vector<8x128xbf16>, vector<128x512xbf16>, vector<8x512xf32> -> vector<8x512xf32>
    %166 = arith.addf %163, %165 : vector<8x512xf32>
    %167 = vector.extract_strided_slice %166 {offsets = [0, 0], sizes = [8, 128], strides = [1, 1]} : vector<8x512xf32> to vector<8x128xf32>
    %168 = arith.negf %167 : vector<8x128xf32>
    %169 = math.exp %168 : vector<8x128xf32>
    %cst_51 = arith.constant 1.000000e+00 : f32
    %170 = vector.broadcast %cst_51 : f32 to vector<8x128xf32>
    %171 = arith.addf %170, %169 : vector<8x128xf32>
    %172 = arith.divf %170, %171 : vector<8x128xf32>
    %173 = vector.extract_strided_slice %166 {offsets = [0, 128], sizes = [8, 128], strides = [1, 1]} : vector<8x512xf32> to vector<8x128xf32>
    %174 = arith.negf %173 : vector<8x128xf32>
    %175 = math.exp %174 : vector<8x128xf32>
    %cst_52 = arith.constant 1.000000e+00 : f32
    %176 = vector.broadcast %cst_52 : f32 to vector<8x128xf32>
    %177 = arith.addf %176, %175 : vector<8x128xf32>
    %178 = arith.divf %176, %177 : vector<8x128xf32>
    %179 = vector.extract_strided_slice %166 {offsets = [0, 256], sizes = [8, 128], strides = [1, 1]} : vector<8x512xf32> to vector<8x128xf32>
    %180 = math.tanh %179 : vector<8x128xf32>
    %181 = vector.extract_strided_slice %166 {offsets = [0, 384], sizes = [8, 128], strides = [1, 1]} : vector<8x512xf32> to vector<8x128xf32>
    %182 = arith.negf %181 : vector<8x128xf32>
    %183 = math.exp %182 : vector<8x128xf32>
    %cst_53 = arith.constant 1.000000e+00 : f32
    %184 = vector.broadcast %cst_53 : f32 to vector<8x128xf32>
    %185 = arith.addf %184, %183 : vector<8x128xf32>
    %186 = arith.divf %184, %185 : vector<8x128xf32>
    %187 = arith.mulf %178, %153 : vector<8x128xf32>
    %188 = arith.mulf %172, %180 : vector<8x128xf32>
    %189 = arith.addf %187, %188 : vector<8x128xf32>
    %190 = math.tanh %189 : vector<8x128xf32>
    %191 = arith.mulf %186, %190 : vector<8x128xf32>
    %192 = arith.index_cast %c4_i32 : i32 to index
    %c0_54 = arith.constant 0 : index
    %c0_55 = arith.constant 0 : index
    %193 = vector.load %arg8[%192, %c0_54, %c0_55] : memref<8x8x128xf32, #tpu.memory_space<vmem>>, vector<1x8x128xf32>
    %194 = vector.shape_cast %193 : vector<1x8x128xf32> to vector<8x128xf32>
    %195 = vector.shape_cast %191 : vector<8x128xf32> to vector<1x8x128xf32>
    tpu.vector_store %arg8[%192, %c0_54, %c0_55], %195 {strides = array<i32>} : memref<8x8x128xf32, #tpu.memory_space<vmem>>, vector<1x8x128xf32>,
    %c5_i32 = arith.constant 5 : i32
    %c8_i32_56 = arith.constant 8 : i32
    %196 = arith.muli %c5_i32, %c8_i32_56 : i32
    %197 = tpu.assume_multiple %196, 8 : i32
    %198 = arith.index_cast %197 : i32 to index
    %c0_57 = arith.constant 0 : index
    %199 = vector.load %arg12[%198, %c0_57] : memref<64x512xf32, #tpu.memory_space<vmem>>, vector<8x512xf32>
    %200 = arith.truncf %191 : vector<8x128xf32> to vector<8x128xbf16>
    %cst_58 = arith.constant dense<0.000000e+00> : vector<8x512xf32>
    %201 = tpu.matmul %200, %12, %cst_58 {dimension_numbers = #tpu.dot_dimension_numbers<[1], [0], [0], [1], [0, 0, 1, 1], [], []>} : vector<8x128xbf16>, vector<128x512xbf16>, vector<8x512xf32> -> vector<8x512xf32>
    %202 = arith.addf %199, %201 : vector<8x512xf32>
    %203 = vector.extract_strided_slice %202 {offsets = [0, 0], sizes = [8, 128], strides = [1, 1]} : vector<8x512xf32> to vector<8x128xf32>
    %204 = arith.negf %203 : vector<8x128xf32>
    %205 = math.exp %204 : vector<8x128xf32>
    %cst_59 = arith.constant 1.000000e+00 : f32
    %206 = vector.broadcast %cst_59 : f32 to vector<8x128xf32>
    %207 = arith.addf %206, %205 : vector<8x128xf32>
    %208 = arith.divf %206, %207 : vector<8x128xf32>
    %209 = vector.extract_strided_slice %202 {offsets = [0, 128], sizes = [8, 128], strides = [1, 1]} : vector<8x512xf32> to vector<8x128xf32>
    %210 = arith.negf %209 : vector<8x128xf32>
    %211 = math.exp %210 : vector<8x128xf32>
    %cst_60 = arith.constant 1.000000e+00 : f32
    %212 = vector.broadcast %cst_60 : f32 to vector<8x128xf32>
    %213 = arith.addf %212, %211 : vector<8x128xf32>
    %214 = arith.divf %212, %213 : vector<8x128xf32>
    %215 = vector.extract_strided_slice %202 {offsets = [0, 256], sizes = [8, 128], strides = [1, 1]} : vector<8x512xf32> to vector<8x128xf32>
    %216 = math.tanh %215 : vector<8x128xf32>
    %217 = vector.extract_strided_slice %202 {offsets = [0, 384], sizes = [8, 128], strides = [1, 1]} : vector<8x512xf32> to vector<8x128xf32>
    %218 = arith.negf %217 : vector<8x128xf32>
    %219 = math.exp %218 : vector<8x128xf32>
    %cst_61 = arith.constant 1.000000e+00 : f32
    %220 = vector.broadcast %cst_61 : f32 to vector<8x128xf32>
    %221 = arith.addf %220, %219 : vector<8x128xf32>
    %222 = arith.divf %220, %221 : vector<8x128xf32>
    %223 = arith.mulf %214, %189 : vector<8x128xf32>
    %224 = arith.mulf %208, %216 : vector<8x128xf32>
    %225 = arith.addf %223, %224 : vector<8x128xf32>
    %226 = math.tanh %225 : vector<8x128xf32>
    %227 = arith.mulf %222, %226 : vector<8x128xf32>
    %228 = arith.index_cast %c5_i32 : i32 to index
    %c0_62 = arith.constant 0 : index
    %c0_63 = arith.constant 0 : index
    %229 = vector.load %arg8[%228, %c0_62, %c0_63] : memref<8x8x128xf32, #tpu.memory_space<vmem>>, vector<1x8x128xf32>
    %230 = vector.shape_cast %229 : vector<1x8x128xf32> to vector<8x128xf32>
    %231 = vector.shape_cast %227 : vector<8x128xf32> to vector<1x8x128xf32>
    tpu.vector_store %arg8[%228, %c0_62, %c0_63], %231 {strides = array<i32>} : memref<8x8x128xf32, #tpu.memory_space<vmem>>, vector<1x8x128xf32>,
    %c6_i32 = arith.constant 6 : i32
    %c8_i32_64 = arith.constant 8 : i32
    %232 = arith.muli %c6_i32, %c8_i32_64 : i32
    %233 = tpu.assume_multiple %232, 8 : i32
    %234 = arith.index_cast %233 : i32 to index
    %c0_65 = arith.constant 0 : index
    %235 = vector.load %arg12[%234, %c0_65] : memref<64x512xf32, #tpu.memory_space<vmem>>, vector<8x512xf32>
    %236 = arith.truncf %227 : vector<8x128xf32> to vector<8x128xbf16>
    %cst_66 = arith.constant dense<0.000000e+00> : vector<8x512xf32>
    %237 = tpu.matmul %236, %12, %cst_66 {dimension_numbers = #tpu.dot_dimension_numbers<[1], [0], [0], [1], [0, 0, 1, 1], [], []>} : vector<8x128xbf16>, vector<128x512xbf16>, vector<8x512xf32> -> vector<8x512xf32>
    %238 = arith.addf %235, %237 : vector<8x512xf32>
    %239 = vector.extract_strided_slice %238 {offsets = [0, 0], sizes = [8, 128], strides = [1, 1]} : vector<8x512xf32> to vector<8x128xf32>
    %240 = arith.negf %239 : vector<8x128xf32>
    %241 = math.exp %240 : vector<8x128xf32>
    %cst_67 = arith.constant 1.000000e+00 : f32
    %242 = vector.broadcast %cst_67 : f32 to vector<8x128xf32>
    %243 = arith.addf %242, %241 : vector<8x128xf32>
    %244 = arith.divf %242, %243 : vector<8x128xf32>
    %245 = vector.extract_strided_slice %238 {offsets = [0, 128], sizes = [8, 128], strides = [1, 1]} : vector<8x512xf32> to vector<8x128xf32>
    %246 = arith.negf %245 : vector<8x128xf32>
    %247 = math.exp %246 : vector<8x128xf32>
    %cst_68 = arith.constant 1.000000e+00 : f32
    %248 = vector.broadcast %cst_68 : f32 to vector<8x128xf32>
    %249 = arith.addf %248, %247 : vector<8x128xf32>
    %250 = arith.divf %248, %249 : vector<8x128xf32>
    %251 = vector.extract_strided_slice %238 {offsets = [0, 256], sizes = [8, 128], strides = [1, 1]} : vector<8x512xf32> to vector<8x128xf32>
    %252 = math.tanh %251 : vector<8x128xf32>
    %253 = vector.extract_strided_slice %238 {offsets = [0, 384], sizes = [8, 128], strides = [1, 1]} : vector<8x512xf32> to vector<8x128xf32>
    %254 = arith.negf %253 : vector<8x128xf32>
    %255 = math.exp %254 : vector<8x128xf32>
    %cst_69 = arith.constant 1.000000e+00 : f32
    %256 = vector.broadcast %cst_69 : f32 to vector<8x128xf32>
    %257 = arith.addf %256, %255 : vector<8x128xf32>
    %258 = arith.divf %256, %257 : vector<8x128xf32>
    %259 = arith.mulf %250, %225 : vector<8x128xf32>
    %260 = arith.mulf %244, %252 : vector<8x128xf32>
    %261 = arith.addf %259, %260 : vector<8x128xf32>
    %262 = math.tanh %261 : vector<8x128xf32>
    %263 = arith.mulf %258, %262 : vector<8x128xf32>
    %264 = arith.index_cast %c6_i32 : i32 to index
    %c0_70 = arith.constant 0 : index
    %c0_71 = arith.constant 0 : index
    %265 = vector.load %arg8[%264, %c0_70, %c0_71] : memref<8x8x128xf32, #tpu.memory_space<vmem>>, vector<1x8x128xf32>
    %266 = vector.shape_cast %265 : vector<1x8x128xf32> to vector<8x128xf32>
    %267 = vector.shape_cast %263 : vector<8x128xf32> to vector<1x8x128xf32>
    tpu.vector_store %arg8[%264, %c0_70, %c0_71], %267 {strides = array<i32>} : memref<8x8x128xf32, #tpu.memory_space<vmem>>, vector<1x8x128xf32>,
    %c7_i32 = arith.constant 7 : i32
    %c8_i32_72 = arith.constant 8 : i32
    %268 = arith.muli %c7_i32, %c8_i32_72 : i32
    %269 = tpu.assume_multiple %268, 8 : i32
    %270 = arith.index_cast %269 : i32 to index
    %c0_73 = arith.constant 0 : index
    %271 = vector.load %arg12[%270, %c0_73] : memref<64x512xf32, #tpu.memory_space<vmem>>, vector<8x512xf32>
    %272 = arith.truncf %263 : vector<8x128xf32> to vector<8x128xbf16>
    %cst_74 = arith.constant dense<0.000000e+00> : vector<8x512xf32>
    %273 = tpu.matmul %272, %12, %cst_74 {dimension_numbers = #tpu.dot_dimension_numbers<[1], [0], [0], [1], [0, 0, 1, 1], [], []>} : vector<8x128xbf16>, vector<128x512xbf16>, vector<8x512xf32> -> vector<8x512xf32>
    %274 = arith.addf %271, %273 : vector<8x512xf32>
    %275 = vector.extract_strided_slice %274 {offsets = [0, 0], sizes = [8, 128], strides = [1, 1]} : vector<8x512xf32> to vector<8x128xf32>
    %276 = arith.negf %275 : vector<8x128xf32>
    %277 = math.exp %276 : vector<8x128xf32>
    %cst_75 = arith.constant 1.000000e+00 : f32
    %278 = vector.broadcast %cst_75 : f32 to vector<8x128xf32>
    %279 = arith.addf %278, %277 : vector<8x128xf32>
    %280 = arith.divf %278, %279 : vector<8x128xf32>
    %281 = vector.extract_strided_slice %274 {offsets = [0, 128], sizes = [8, 128], strides = [1, 1]} : vector<8x512xf32> to vector<8x128xf32>
    %282 = arith.negf %281 : vector<8x128xf32>
    %283 = math.exp %282 : vector<8x128xf32>
    %cst_76 = arith.constant 1.000000e+00 : f32
    %284 = vector.broadcast %cst_76 : f32 to vector<8x128xf32>
    %285 = arith.addf %284, %283 : vector<8x128xf32>
    %286 = arith.divf %284, %285 : vector<8x128xf32>
    %287 = vector.extract_strided_slice %274 {offsets = [0, 256], sizes = [8, 128], strides = [1, 1]} : vector<8x512xf32> to vector<8x128xf32>
    %288 = math.tanh %287 : vector<8x128xf32>
    %289 = vector.extract_strided_slice %274 {offsets = [0, 384], sizes = [8, 128], strides = [1, 1]} : vector<8x512xf32> to vector<8x128xf32>
    %290 = arith.negf %289 : vector<8x128xf32>
    %291 = math.exp %290 : vector<8x128xf32>
    %cst_77 = arith.constant 1.000000e+00 : f32
    %292 = vector.broadcast %cst_77 : f32 to vector<8x128xf32>
    %293 = arith.addf %292, %291 : vector<8x128xf32>
    %294 = arith.divf %292, %293 : vector<8x128xf32>
    %295 = arith.mulf %286, %261 : vector<8x128xf32>
    %296 = arith.mulf %280, %288 : vector<8x128xf32>
    %297 = arith.addf %295, %296 : vector<8x128xf32>
    %298 = math.tanh %297 : vector<8x128xf32>
    %299 = arith.mulf %294, %298 : vector<8x128xf32>
    %300 = arith.index_cast %c7_i32 : i32 to index
    %c0_78 = arith.constant 0 : index
    %c0_79 = arith.constant 0 : index
    %301 = vector.load %arg8[%300, %c0_78, %c0_79] : memref<8x8x128xf32, #tpu.memory_space<vmem>>, vector<1x8x128xf32>
    %302 = vector.shape_cast %301 : vector<1x8x128xf32> to vector<8x128xf32>
    %303 = vector.shape_cast %299 : vector<8x128xf32> to vector<1x8x128xf32>
    tpu.vector_store %arg8[%300, %c0_78, %c0_79], %303 {strides = array<i32>} : memref<8x8x128xf32, #tpu.memory_space<vmem>>, vector<1x8x128xf32>,
    %c8_i32_80 = arith.constant 8 : i32
    %c0_81 = arith.constant 0 : index
    %c0_82 = arith.constant 0 : index
    %304 = vector.load %arg10[%c0_81, %c0_82] : memref<8x128xf32, #tpu.memory_space<vmem>>, vector<8x128xf32>
    tpu.vector_store %arg10[%c0_81, %c0_82], %299 {strides = array<i32>} : memref<8x128xf32, #tpu.memory_space<vmem>>, vector<8x128xf32>,
    %c0_83 = arith.constant 0 : index
    %c0_84 = arith.constant 0 : index
    %305 = vector.load %arg11[%c0_83, %c0_84] : memref<8x128xf32, #tpu.memory_space<vmem>>, vector<8x128xf32>
    tpu.vector_store %arg11[%c0_83, %c0_84], %297 {strides = array<i32>} : memref<8x128xf32, #tpu.memory_space<vmem>>, vector<8x128xf32>,
    %306 = arith.extui %13 : i1 to i32
    %c0_i32_85 = arith.constant 0 : i32
    %307 = arith.cmpi ne, %306, %c0_i32_85 : i32
    scf.if %307 {
      %c0_86 = arith.constant 0 : index
      %c0_87 = arith.constant 0 : index
      %308 = vector.load %arg9[%c0_86, %c0_87] : memref<8x128xf32, #tpu.memory_space<vmem>>, vector<8x128xf32>
      tpu.vector_store %arg9[%c0_86, %c0_87], %297 {strides = array<i32>} : memref<8x128xf32, #tpu.memory_space<vmem>>, vector<8x128xf32>,
    } else {
    }
    return
  }
  func.func @transform_0(%arg0: i32, %arg1: i32) -> (i32, i32, i32) {
    %c0_i32 = arith.constant 0 : i32
    %c0_i32_0 = arith.constant 0 : i32
    return %arg1, %arg0, %c0_i32 : i32, i32, i32
  }
  func.func @transform_1(%arg0: i32, %arg1: i32) -> (i32, i32) {
    %c0_i32 = arith.constant 0 : i32
    %c0_i32_0 = arith.constant 0 : i32
    %c0_i32_1 = arith.constant 0 : i32
    return %c0_i32, %c0_i32_0 : i32, i32
  }
  func.func @transform_2(%arg0: i32, %arg1: i32) -> (i32, i32) {
    %c0_i32 = arith.constant 0 : i32
    %c0_i32_0 = arith.constant 0 : i32
    %c0_i32_1 = arith.constant 0 : i32
    return %c0_i32, %c0_i32_0 : i32, i32
  }
  func.func @transform_3(%arg0: i32, %arg1: i32) -> (i32, i32) {
    %c0_i32 = arith.constant 0 : i32
    %c0_i32_0 = arith.constant 0 : i32
    %c0_i32_1 = arith.constant 0 : i32
    return %c0_i32, %c0_i32_0 : i32, i32
  }
  func.func @transform_4(%arg0: i32, %arg1: i32) -> (i32, i32) {
    %c0_i32 = arith.constant 0 : i32
    %c0_i32_0 = arith.constant 0 : i32
    return %arg0, %c0_i32 : i32, i32
  }
  func.func @transform_5(%arg0: i32, %arg1: i32) -> (i32, i32) {
    %c0_i32 = arith.constant 0 : i32
    %c0_i32_0 = arith.constant 0 : i32
    return %arg0, %c0_i32 : i32, i32
  }
  func.func @transform_6(%arg0: i32, %arg1: i32) -> (i32, i32, i32) {
    %c0_i32 = arith.constant 0 : i32
    %c0_i32_0 = arith.constant 0 : i32
    return %arg1, %arg0, %c0_i32 : i32, i32, i32
  }
  func.func @transform_7(%arg0: i32, %arg1: i32) -> (i32, i32) {
    %c0_i32 = arith.constant 0 : i32
    %c0_i32_0 = arith.constant 0 : i32
    return %arg0, %c0_i32 : i32, i32
  }
}

</mosaic_0001>

<llo_original>
// kernel: _lstm_forward_impl.1
$region0: #{_lstm_forward_impl.1}
  #allocation0 [shape = 'u32[]', space=smem, size = 0x4, offset = 0x4, fixed_abs, tag = 'smem constant byte address 0x4 - core index']
  #allocation1 [shape = 'u32[72,128]{1,0:T(1,128)}', space=vmem, size = 0x9000, scoped, tag = 'internal scratch']
  #allocation2 [shape = 'f32[8,128]{1,0:T(8,128)}', space=vmem, size = 0x1000, scoped, tag = 'scratch operand']
  #allocation3 [shape = 'f32[8,128]{1,0:T(8,128)}', space=vmem, size = 0x1000, scoped, tag = 'scratch operand']
  #allocation4 [shape = 'f32[64,512]{1,0:T(8,128)}', space=vmem, size = 0x20000, scoped, tag = 'scratch operand']
  %s0 = inlined_call_operand.hbm [shape: f32[8,8,32], index: 0, kind: input, shape index: {}]
  %s1 = inlined_call_operand.hbm [shape: bf16[32,512], index: 1, kind: input, shape index: {}]
  %s2 = inlined_call_operand.hbm [shape: bf16[128,512], index: 2, kind: input, shape index: {}]
  %s3 = inlined_call_operand.hbm [shape: f32[1,512], index: 3, kind: input, shape index: {}]
  %s4 = inlined_call_operand.hbm [shape: f32[8,128], index: 4, kind: input, shape index: {}]
  %s5 = inlined_call_operand.hbm [shape: f32[8,128], index: 5, kind: input, shape index: {}]
  %s6 = inlined_call_operand.vmem [shape: f32[8,8,128], index: 6, kind: output, shape index: {0}]
  %s7 = inlined_call_operand.hbm [shape: f32[8,128], index: 7, kind: output, shape index: {1}]
  %8 = xla_tuple %s6, %s7
  %s9 = sld [smem:[#allocation0]]
  $region74: #{_lstm_forward_impl.1} parent=0
    _
  %s11 = ssub.s32 1, %s9
  %s12 = scalar_select 0, %s11, %s9
  $region1: #{_lstm_forward_impl.1} parent=0
    #allocation5 [shape = 'u8[32768]{0}', space=vmem, size = 0x8000, scoped, tag = 'input window, operand 0, single buffered']
    #allocation6 [shape = 's32[1]{0}', space=sflag, size = 0x4, scoped, tag = 'scoped memory for _lstm_forward_impl.1']
    #allocation7 [shape = 's32[1]{0}', space=sflag, size = 0x4, scoped, tag = 'scoped memory for _lstm_forward_impl.1']
    #allocation8 [shape = 'u8[32768]{0}', space=vmem, size = 0x8000, scoped, tag = 'input window, operand 1, single buffered']
    #allocation9 [shape = 's32[1]{0}', space=sflag, size = 0x4, scoped, tag = 'scoped memory for _lstm_forward_impl.1']
    #allocation10 [shape = 'u8[131072]{0}', space=vmem, size = 0x20000, scoped, tag = 'input window, operand 2, single buffered']
    #allocation11 [shape = 'u8[2048]{0}', space=vmem, size = 0x800, scoped, tag = 'input window, operand 3, single buffered']
    #allocation12 [shape = 's32[1]{0}', space=sflag, size = 0x4, scoped, tag = 'scoped memory for _lstm_forward_impl.1']
    #allocation13 [shape = 'u8[4096]{0}', space=vmem, size = 0x1000, scoped, tag = 'input window, operand 4, single buffered']
    #allocation14 [shape = 'u8[4096]{0}', space=vmem, size = 0x1000, scoped, tag = 'input window, operand 5, single buffered']
    #allocation15 [shape = 's32[1]{0}', space=sflag, size = 0x4, scoped, tag = 'scoped memory for _lstm_forward_impl.1']
    #allocation16 [shape = 'u8[4096]{0}', space=vmem, size = 0x1000, scoped, tag = 'output window, operand 1, single buffered']
    %13 = vsyncpa [#allocation6], 0
    %14 = vsyncpa [#allocation9], 0
    %15 = vsyncpa [#allocation12], 0
    %16 = vsyncpa [#allocation15], 0
    %17 = vsyncpa [#allocation7], 0
    // Predicated region
    $region2: #{_lstm_forward_impl.1} parent=1 // pred_check
      _
    $region3: #{_lstm_forward_impl.1} parent=1 // pred_check_branch
      %19 = sbr.rel (0) target = $region5
    $region4: #{_lstm_forward_impl.1} parent=1 // pred_region
      %21 = vsyncadd [#allocation6], 0
      %s22 = sshll.u32 %s0, 4
      %s23 = int_to_ptr.hbm [resolvable:$true] %s22
      %s24 = sshll.u32 [#allocation5], 4
      %s25 = int_to_ptr.vmem [resolvable:$true] %s24
      %30 = dma.hbm_to_vmem [thread:$0]  %s23, 1024, %s25, [#allocation6], 128, 128, 8
    $region5: #{_lstm_forward_impl.1} parent=1 // pred_fallthru
      _
    // Predicated region
    $region6: #{_lstm_forward_impl.1} parent=1 // pred_check
      _
    $region7: #{_lstm_forward_impl.1} parent=1 // pred_check_branch
      %32 = sbr.rel (0) target = $region9
    $region8: #{_lstm_forward_impl.1} parent=1 // pred_region
      %34 = vsyncadd [#allocation9], 0
      %s35 = sshll.u32 %s1, 4
      %s36 = int_to_ptr.hbm [resolvable:$true] %s35
      %s37 = sshll.u32 [#allocation8], 4
      %s38 = int_to_ptr.vmem [resolvable:$true] %s37
      %43 = dma.hbm_to_vmem [thread:$0]  %s36, 1024, %s38, [#allocation9], 256, 256, 16
    $region9: #{_lstm_forward_impl.1} parent=1 // pred_fallthru
      _
    // Predicated region
    $region10: #{_lstm_forward_impl.1} parent=1 // pred_check
      _
    $region11: #{_lstm_forward_impl.1} parent=1 // pred_check_branch
      %45 = sbr.rel (0) target = $region13
    $region12: #{_lstm_forward_impl.1} parent=1 // pred_region
      %47 = vsyncadd [#allocation9], 0
      %s48 = sshll.u32 %s2, 4
      %s49 = int_to_ptr.hbm [resolvable:$true] %s48
      %s50 = sshll.u32 [#allocation10], 4
      %s51 = int_to_ptr.vmem [resolvable:$true] %s50
      %56 = dma.hbm_to_vmem [thread:$0]  %s49, 4096, %s51, [#allocation9], 256, 256, 16
    $region13: #{_lstm_forward_impl.1} parent=1 // pred_fallthru
      _
    // Predicated region
    $region14: #{_lstm_forward_impl.1} parent=1 // pred_check
      _
    $region15: #{_lstm_forward_impl.1} parent=1 // pred_check_branch
      %58 = sbr.rel (0) target = $region17
    $region16: #{_lstm_forward_impl.1} parent=1 // pred_region
      %60 = vsyncadd [#allocation12], 0
      %s62 = sshll.u32 %s3, 4
      %s63 = int_to_ptr.hbm [resolvable:$true] %s62
      %s64 = sshll.u32 [#allocation11], 4
      %s65 = int_to_ptr.vmem [resolvable:$true] %s64
      %67 = dma.hbm_to_vmem [thread:$0]  %s63, 64, %s65, [#allocation12]
    $region17: #{_lstm_forward_impl.1} parent=1 // pred_fallthru
      _
    // Predicated region
    $region18: #{_lstm_forward_impl.1} parent=1 // pred_check
      _
    $region19: #{_lstm_forward_impl.1} parent=1 // pred_check_branch
      %69 = sbr.rel (0) target = $region21
    $region20: #{_lstm_forward_impl.1} parent=1 // pred_region
      %71 = vsyncadd [#allocation12], 0
      %s73 = sshll.u32 %s4, 4
      %s74 = int_to_ptr.hbm [resolvable:$true] %s73
      %s75 = sshll.u32 [#allocation13], 4
      %s76 = int_to_ptr.vmem [resolvable:$true] %s75
      %78 = dma.hbm_to_vmem [thread:$0]  %s74, 128, %s76, [#allocation12]
    $region21: #{_lstm_forward_impl.1} parent=1 // pred_fallthru
      _
    // Predicated region
    $region22: #{_lstm_forward_impl.1} parent=1 // pred_check
      _
    $region23: #{_lstm_forward_impl.1} parent=1 // pred_check_branch
      %80 = sbr.rel (0) target = $region25
    $region24: #{_lstm_forward_impl.1} parent=1 // pred_region
      %82 = vsyncadd [#allocation15], 0
      %s84 = sshll.u32 %s5, 4
      %s85 = int_to_ptr.hbm [resolvable:$true] %s84
      %s86 = sshll.u32 [#allocation14], 4
      %s87 = int_to_ptr.vmem [resolvable:$true] %s86
      %89 = dma.hbm_to_vmem [thread:$0]  %s85, 128, %s87, [#allocation15]
    $region25: #{_lstm_forward_impl.1} parent=1 // pred_fallthru
      _
    // Predicated region
    $region26: #{_lstm_forward_impl.1} parent=1 // pred_check
      _
    $region27: #{_lstm_forward_impl.1} parent=1 // pred_check_branch
      %91 = sbr.rel (0) target = $region29
    $region28: #{_lstm_forward_impl.1} parent=1 // pred_region
      %93 = dma.done [#allocation6], 1024
    $region29: #{_lstm_forward_impl.1} parent=1 // pred_fallthru
      _
    // Predicated region
    $region30: #{_lstm_forward_impl.1} parent=1 // pred_check
      _
    $region31: #{_lstm_forward_impl.1} parent=1 // pred_check_branch
      %95 = sbr.rel (0) target = $region33
    $region32: #{_lstm_forward_impl.1} parent=1 // pred_region
      %97 = dma.done [#allocation9], 1024
    $region33: #{_lstm_forward_impl.1} parent=1 // pred_fallthru
      _
    // Predicated region
    $region34: #{_lstm_forward_impl.1} parent=1 // pred_check
      _
    $region35: #{_lstm_forward_impl.1} parent=1 // pred_check_branch
      %99 = sbr.rel (0) target = $region37
    $region36: #{_lstm_forward_impl.1} parent=1 // pred_region
      %101 = dma.done [#allocation9], 4096
    $region37: #{_lstm_forward_impl.1} parent=1 // pred_fallthru
      _
    // Predicated region
    $region38: #{_lstm_forward_impl.1} parent=1 // pred_check
      _
    $region39: #{_lstm_forward_impl.1} parent=1 // pred_check_branch
      %103 = sbr.rel (0) target = $region41
    $region40: #{_lstm_forward_impl.1} parent=1 // pred_region
      %105 = dma.done [#allocation12], 64
    $region41: #{_lstm_forward_impl.1} parent=1 // pred_fallthru
      _
    // Predicated region
    $region42: #{_lstm_forward_impl.1} parent=1 // pred_check
      _
    $region43: #{_lstm_forward_impl.1} parent=1 // pred_check_branch
      %107 = sbr.rel (0) target = $region45
    $region44: #{_lstm_forward_impl.1} parent=1 // pred_region
      %109 = dma.done [#allocation12], 128
    $region45: #{_lstm_forward_impl.1} parent=1 // pred_fallthru
      _
    // Predicated region
    $region46: #{_lstm_forward_impl.1} parent=1 // pred_check
      _
    $region47: #{_lstm_forward_impl.1} parent=1 // pred_check_branch
      %111 = sbr.rel (0) target = $region49
    $region48: #{_lstm_forward_impl.1} parent=1 // pred_region
      %113 = dma.done [#allocation15], 128
    $region49: #{_lstm_forward_impl.1} parent=1 // pred_fallthru
      _
    %p115 = scmp.eq.s32.totalorder 0, 0
    // Predicated region
    $region50: #{_lstm_forward_impl.1} parent=1 // pred_check
      %p116 = pneg %p115
    $region51: #{_lstm_forward_impl.1} parent=1 // pred_check_branch
      %118 = sbr.rel (%p116) target = $region53
    $region52: #{_lstm_forward_impl.1} parent=1 // pred_region
      %v119 = vld [vmem:[#allocation13] sm:$0xff]
      %120 = vst [vmem:[#allocation2] sm:$0xff] %v119
      %v121 = vld [vmem:[#allocation14] sm:$0xff]
      %122 = vst [vmem:[#allocation3] sm:$0xff] %v121
    $region53: #{_lstm_forward_impl.1} parent=1 // pred_fallthru
      _
    %v123 = vld [vmem:[#allocation5] sm:$0xff]
    %v124 = vld [vmem:[#allocation5 + $0x8] sm:$0xff]
    %v125 = vld [vmem:[#allocation5 + $0x10] sm:$0xff]
    %v126 = vld [vmem:[#allocation5 + $0x18] sm:$0xff]
    %v127 = vld [vmem:[#allocation5 + $0x20] sm:$0xff]
    %v128 = vld [vmem:[#allocation5 + $0x28] sm:$0xff]
    %v129 = vld [vmem:[#allocation5 + $0x30] sm:$0xff]
    %v130 = vld [vmem:[#allocation5 + $0x38] sm:$0xff]
    %v131 = vpack.c.bf16 %v124, %v123
    %v132 = vpack.c.bf16 %v126, %v125
    %v133 = vpack.c.bf16 %v128, %v127
    %v134 = vpack.c.bf16 %v130, %v129
    %v135 = vld [vmem:[#allocation8] sm:$0xff]
    %v136 = vld [vmem:[#allocation8 + $0x8] sm:$0xff]
    %v137 = vld [vmem:[#allocation8 + $0x10] sm:$0xff]
    %v138 = vld [vmem:[#allocation8 + $0x18] sm:$0xff]
    %v139 = vld [vmem:[#allocation8 + $0x20] sm:$0xff]
    %v140 = vld [vmem:[#allocation8 + $0x28] sm:$0xff]
    %v141 = vld [vmem:[#allocation8 + $0x30] sm:$0xff]
    %v142 = vld [vmem:[#allocation8 + $0x38] sm:$0xff]
    %v143 = vld [vmem:[#allocation11] sm:$0xf]
    %v145 = vperm.slane %v143, 0
    %v146 = vperm.slane %v143, 1
    %v147 = vperm.slane %v143, 2
    %v148 = vperm.slane %v143, 3
    %v161 = vunpack.c.l.b16 %v135
    %v162 = vunpack.c.h.b16 %v135
    %v163 = vunpack.c.l.b16 %v136
    %v164 = vunpack.c.h.b16 %v136
    %v165 = vunpack.c.l.b16 %v137
    %v166 = vunpack.c.h.b16 %v137
    %v167 = vunpack.c.l.b16 %v138
    %v168 = vunpack.c.h.b16 %v138
    %v169 = vunpack.c.l.b16 %v139
    %v170 = vunpack.c.h.b16 %v139
    %v171 = vunpack.c.l.b16 %v140
    %v172 = vunpack.c.h.b16 %v140
    %v173 = vunpack.c.l.b16 %v141
    %v174 = vunpack.c.h.b16 %v141
    %v175 = vunpack.c.l.b16 %v142
    %v176 = vunpack.c.h.b16 %v142
    %v177 = vpack.c.b16 %v165, %v161
    %v178 = vpack.c.b16 %v166, %v162
    %v179 = vpack.c.b16 %v167, %v163
    %v180 = vpack.c.b16 %v168, %v164
    %v181 = vpack.c.b16 %v173, %v169
    %v182 = vpack.c.b16 %v174, %v170
    %v183 = vpack.c.b16 %v175, %v171
    %v184 = vpack.c.b16 %v176, %v172
    %vm193 = vcmask 261120
    %v195 = vsel %vm193, %v131, 0
    %v198 = vsel %vm193, %v132, 0
    %v201 = vsel %vm193, %v133, 0
    %v204 = vsel %vm193, %v134, 0
    %206 = vmatpush.bf16.msra.mxu0 0
    %207 = vmatpush.bf16.msra.mxu0 0
    %208 = vmatpush.bf16.msra.mxu0 0
    %209 = vmatpush.bf16.msra.mxu0 0
    %210 = vmatpush.bf16.msra.mxu0 0
    %211 = vmatpush.bf16.msra.mxu0 0
    %212 = vmatpush.bf16.msra.mxu0 %v181
    %213 = vmatpush.bf16.msra.mxu0 %v177
    %214 = vmatmul.bf16.gmra.mxu0 %v195
    %v215 = vpop.f32.mrf.mxu0
    %v216 = vadd.f32 %v145, %v215
    %v217 = vpop.f32.mrf.mxu0
    %v218 = vadd.f32 %v145, %v217
    %219 = vmatmul.bf16.gmra.mxu0 %v198
    %v220 = vpop.f32.mrf.mxu0
    %v221 = vadd.f32 %v145, %v220
    %v222 = vpop.f32.mrf.mxu0
    %v223 = vadd.f32 %v145, %v222
    %224 = vmatmul.bf16.gmra.mxu0 %v201
    %v225 = vpop.f32.mrf.mxu0
    %v226 = vadd.f32 %v145, %v225
    %v227 = vpop.f32.mrf.mxu0
    %v228 = vadd.f32 %v145, %v227
    %229 = vmatmul.bf16.gmra.mxu0 %v204
    %v230 = vpop.f32.mrf.mxu0
    %v231 = vadd.f32 %v145, %v230
    %v232 = vpop.f32.mrf.mxu0
    %v233 = vadd.f32 %v145, %v232
    %234 = vdwg.mxu0
    %235 = vmatpush.bf16.msra.mxu0 0
    %236 = vmatpush.bf16.msra.mxu0 0
    %237 = vmatpush.bf16.msra.mxu0 0
    %238 = vmatpush.bf16.msra.mxu0 0
    %239 = vmatpush.bf16.msra.mxu0 0
    %240 = vmatpush.bf16.msra.mxu0 0
    %241 = vmatpush.bf16.msra.mxu0 %v182
    %242 = vmatpush.bf16.msra.mxu0 %v178
    %243 = vmatmul.bf16.gmra.mxu0 %v195
    %v244 = vpop.f32.mrf.mxu0
    %v245 = vadd.f32 %v146, %v244
    %v246 = vpop.f32.mrf.mxu0
    %v247 = vadd.f32 %v146, %v246
    %248 = vmatmul.bf16.gmra.mxu0 %v198
    %v249 = vpop.f32.mrf.mxu0
    %v250 = vadd.f32 %v146, %v249
    %v251 = vpop.f32.mrf.mxu0
    %v252 = vadd.f32 %v146, %v251
    %253 = vmatmul.bf16.gmra.mxu0 %v201
    %v254 = vpop.f32.mrf.mxu0
    %v255 = vadd.f32 %v146, %v254
    %v256 = vpop.f32.mrf.mxu0
    %v257 = vadd.f32 %v146, %v256
    %258 = vmatmul.bf16.gmra.mxu0 %v204
    %v259 = vpop.f32.mrf.mxu0
    %v260 = vadd.f32 %v146, %v259
    %v261 = vpop.f32.mrf.mxu0
    %v262 = vadd.f32 %v146, %v261
    %263 = vdwg.mxu0
    %264 = vmatpush.bf16.msra.mxu0 0
    %265 = vmatpush.bf16.msra.mxu0 0
    %266 = vmatpush.bf16.msra.mxu0 0
    %267 = vmatpush.bf16.msra.mxu0 0
    %268 = vmatpush.bf16.msra.mxu0 0
    %269 = vmatpush.bf16.msra.mxu0 0
    %270 = vmatpush.bf16.msra.mxu0 %v183
    %271 = vmatpush.bf16.msra.mxu0 %v179
    %272 = vmatmul.bf16.gmra.mxu0 %v195
    %v273 = vpop.f32.mrf.mxu0
    %v274 = vadd.f32 %v147, %v273
    %v275 = vpop.f32.mrf.mxu0
    %v276 = vadd.f32 %v147, %v275
    %277 = vmatmul.bf16.gmra.mxu0 %v198
    %v278 = vpop.f32.mrf.mxu0
    %v279 = vadd.f32 %v147, %v278
    %v280 = vpop.f32.mrf.mxu0
    %v281 = vadd.f32 %v147, %v280
    %282 = vmatmul.bf16.gmra.mxu0 %v201
    %v283 = vpop.f32.mrf.mxu0
    %v284 = vadd.f32 %v147, %v283
    %v285 = vpop.f32.mrf.mxu0
    %v286 = vadd.f32 %v147, %v285
    %287 = vmatmul.bf16.gmra.mxu0 %v204
    %v288 = vpop.f32.mrf.mxu0
    %v289 = vadd.f32 %v147, %v288
    %v290 = vpop.f32.mrf.mxu0
    %v291 = vadd.f32 %v147, %v290
    %292 = vdwg.mxu0
    %293 = vmatpush.bf16.msra.mxu0 0
    %294 = vmatpush.bf16.msra.mxu0 0
    %295 = vmatpush.bf16.msra.mxu0 0
    %296 = vmatpush.bf16.msra.mxu0 0
    %297 = vmatpush.bf16.msra.mxu0 0
    %298 = vmatpush.bf16.msra.mxu0 0
    %299 = vmatpush.bf16.msra.mxu0 %v184
    %300 = vmatpush.bf16.msra.mxu0 %v180
    %301 = vmatmul.bf16.gmra.mxu0 %v195
    %v302 = vpop.f32.mrf.mxu0
    %v303 = vadd.f32 %v148, %v302
    %v304 = vpop.f32.mrf.mxu0
    %v305 = vadd.f32 %v148, %v304
    %306 = vmatmul.bf16.gmra.mxu0 %v198
    %v307 = vpop.f32.mrf.mxu0
    %v308 = vadd.f32 %v148, %v307
    %v309 = vpop.f32.mrf.mxu0
    %v310 = vadd.f32 %v148, %v309
    %311 = vmatmul.bf16.gmra.mxu0 %v201
    %v312 = vpop.f32.mrf.mxu0
    %v313 = vadd.f32 %v148, %v312
    %v314 = vpop.f32.mrf.mxu0
    %v315 = vadd.f32 %v148, %v314
    %316 = vmatmul.bf16.gmra.mxu0 %v204
    %v317 = vpop.f32.mrf.mxu0
    %v318 = vadd.f32 %v148, %v317
    %v319 = vpop.f32.mrf.mxu0
    %v320 = vadd.f32 %v148, %v319
    %321 = vdwg.mxu0
    %322 = vst [vmem:[#allocation4] sm:$0xff] %v216
    %323 = vst [vmem:[#allocation4 + $0x8] sm:$0xff] %v245
    %324 = vst [vmem:[#allocation4 + $0x10] sm:$0xff] %v274
    %325 = vst [vmem:[#allocation4 + $0x18] sm:$0xff] %v303
    %326 = vst [vmem:[#allocation4 + $0x20] sm:$0xff] %v218
    %327 = vst [vmem:[#allocation4 + $0x28] sm:$0xff] %v247
    %328 = vst [vmem:[#allocation4 + $0x30] sm:$0xff] %v276
    %329 = vst [vmem:[#allocation4 + $0x38] sm:$0xff] %v305
    %330 = vst [vmem:[#allocation4 + $0x40] sm:$0xff] %v221
    %331 = vst [vmem:[#allocation4 + $0x48] sm:$0xff] %v250
    %332 = vst [vmem:[#allocation4 + $0x50] sm:$0xff] %v279
    %333 = vst [vmem:[#allocation4 + $0x58] sm:$0xff] %v308
    %334 = vst [vmem:[#allocation4 + $0x60] sm:$0xff] %v223
    %335 = vst [vmem:[#allocation4 + $0x68] sm:$0xff] %v252
    %336 = vst [vmem:[#allocation4 + $0x70] sm:$0xff] %v281
    %337 = vst [vmem:[#allocation4 + $0x78] sm:$0xff] %v310
    %338 = vst [vmem:[#allocation4 + $0x80] sm:$0xff] %v226
    %339 = vst [vmem:[#allocation4 + $0x88] sm:$0xff] %v255
    %340 = vst [vmem:[#allocation4 + $0x90] sm:$0xff] %v284
    %341 = vst [vmem:[#allocation4 + $0x98] sm:$0xff] %v313
    %342 = vst [vmem:[#allocation4 + $0xa0] sm:$0xff] %v228
    %343 = vst [vmem:[#allocation4 + $0xa8] sm:$0xff] %v257
    %344 = vst [vmem:[#allocation4 + $0xb0] sm:$0xff] %v286
    %345 = vst [vmem:[#allocation4 + $0xb8] sm:$0xff] %v315
    %346 = vst [vmem:[#allocation4 + $0xc0] sm:$0xff] %v231
    %347 = vst [vmem:[#allocation4 + $0xc8] sm:$0xff] %v260
    %348 = vst [vmem:[#allocation4 + $0xd0] sm:$0xff] %v289
    %349 = vst [vmem:[#allocation4 + $0xd8] sm:$0xff] %v318
    %350 = vst [vmem:[#allocation4 + $0xe0] sm:$0xff] %v233
    %351 = vst [vmem:[#allocation4 + $0xe8] sm:$0xff] %v262
    %352 = vst [vmem:[#allocation4 + $0xf0] sm:$0xff] %v291
    %353 = vst [vmem:[#allocation4 + $0xf8] sm:$0xff] %v320
    %v354 = vld [vmem:[#allocation10] sm:$0xff]
    %v355 = vld [vmem:[#allocation10 + $0x8] sm:$0xff]
    %v356 = vld [vmem:[#allocation10 + $0x10] sm:$0xff]
    %v357 = vld [vmem:[#allocation10 + $0x18] sm:$0xff]
    %v358 = vld [vmem:[#allocation10 + $0x20] sm:$0xff]
    %v359 = vld [vmem:[#allocation10 + $0x28] sm:$0xff]
    %v360 = vld [vmem:[#allocation10 + $0x30] sm:$0xff]
    %v361 = vld [vmem:[#allocation10 + $0x38] sm:$0xff]
    %v362 = vld [vmem:[#allocation10 + $0x40] sm:$0xff]
    %v363 = vld [vmem:[#allocation10 + $0x48] sm:$0xff]
    %v364 = vld [vmem:[#allocation10 + $0x50] sm:$0xff]
    %v365 = vld [vmem:[#allocation10 + $0x58] sm:$0xff]
    %v366 = vld [vmem:[#allocation10 + $0x60] sm:$0xff]
    %v367 = vld [vmem:[#allocation10 + $0x68] sm:$0xff]
    %v368 = vld [vmem:[#allocation10 + $0x70] sm:$0xff]
    %v369 = vld [vmem:[#allocation10 + $0x78] sm:$0xff]
    %v370 = vld [vmem:[#allocation10 + $0x80] sm:$0xff]
    %v371 = vld [vmem:[#allocation10 + $0x88] sm:$0xff]
    %v372 = vld [vmem:[#allocation10 + $0x90] sm:$0xff]
    %v373 = vld [vmem:[#allocation10 + $0x98] sm:$0xff]
    %v374 = vld [vmem:[#allocation10 + $0xa0] sm:$0xff]
    %v375 = vld [vmem:[#allocation10 + $0xa8] sm:$0xff]
    %v376 = vld [vmem:[#allocation10 + $0xb0] sm:$0xff]
    %v377 = vld [vmem:[#allocation10 + $0xb8] sm:$0xff]
    %v378 = vld [vmem:[#allocation10 + $0xc0] sm:$0xff]
    %v379 = vld [vmem:[#allocation10 + $0xc8] sm:$0xff]
    %v380 = vld [vmem:[#allocation10 + $0xd0] sm:$0xff]
    %v381 = vld [vmem:[#allocation10 + $0xd8] sm:$0xff]
    %v382 = vld [vmem:[#allocation10 + $0xe0] sm:$0xff]
    %v383 = vld [vmem:[#allocation10 + $0xe8] sm:$0xff]
    %v384 = vld [vmem:[#allocation10 + $0xf0] sm:$0xff]
    %v385 = vld [vmem:[#allocation10 + $0xf8] sm:$0xff]
    %v386 = vld [vmem:[#allocation2] sm:$0xff]
    %v387 = vld [vmem:[#allocation3] sm:$0xff]
    %s388 = smul.u32 0, 4
    %s389 = smul.addr %s388, 8
    %s390 = scalar_lea.vmem [#allocation4], %s389
    %v391 = vld [vmem:[%s390] sm:$0xff]
    %v392 = vld [vmem:[%s390 + $0x8] sm:$0xff]
    %v393 = vld [vmem:[%s390 + $0x10] sm:$0xff]
    %v394 = vld [vmem:[%s390 + $0x18] sm:$0xff]
    %v395 = vpack.c.bf16 %v386, %v386
    %v428 = vunpack.c.l.b16 %v354
    %v429 = vunpack.c.h.b16 %v354
    %v430 = vunpack.c.l.b16 %v355
    %v431 = vunpack.c.h.b16 %v355
    %v432 = vunpack.c.l.b16 %v356
    %v433 = vunpack.c.h.b16 %v356
    %v434 = vunpack.c.l.b16 %v357
    %v435 = vunpack.c.h.b16 %v357
    %v436 = vunpack.c.l.b16 %v358
    %v437 = vunpack.c.h.b16 %v358
    %v438 = vunpack.c.l.b16 %v359
    %v439 = vunpack.c.h.b16 %v359
    %v440 = vunpack.c.l.b16 %v360
    %v441 = vunpack.c.h.b16 %v360
    %v442 = vunpack.c.l.b16 %v361
    %v443 = vunpack.c.h.b16 %v361
    %v444 = vunpack.c.l.b16 %v362
    %v445 = vunpack.c.h.b16 %v362
    %v446 = vunpack.c.l.b16 %v363
    %v447 = vunpack.c.h.b16 %v363
    %v448 = vunpack.c.l.b16 %v364
    %v449 = vunpack.c.h.b16 %v364
    %v450 = vunpack.c.l.b16 %v365
    %v451 = vunpack.c.h.b16 %v365
    %v452 = vunpack.c.l.b16 %v366
    %v453 = vunpack.c.h.b16 %v366
    %v454 = vunpack.c.l.b16 %v367
    %v455 = vunpack.c.h.b16 %v367
    %v456 = vunpack.c.l.b16 %v368
    %v457 = vunpack.c.h.b16 %v368
    %v458 = vunpack.c.l.b16 %v369
    %v459 = vunpack.c.h.b16 %v369
    %v460 = vunpack.c.l.b16 %v370
    %v461 = vunpack.c.h.b16 %v370
    %v462 = vunpack.c.l.b16 %v371
    %v463 = vunpack.c.h.b16 %v371
    %v464 = vunpack.c.l.b16 %v372
    %v465 = vunpack.c.h.b16 %v372
    %v466 = vunpack.c.l.b16 %v373
    %v467 = vunpack.c.h.b16 %v373
    %v468 = vunpack.c.l.b16 %v374
    %v469 = vunpack.c.h.b16 %v374
    %v470 = vunpack.c.l.b16 %v375
    %v471 = vunpack.c.h.b16 %v375
    %v472 = vunpack.c.l.b16 %v376
    %v473 = vunpack.c.h.b16 %v376
    %v474 = vunpack.c.l.b16 %v377
    %v475 = vunpack.c.h.b16 %v377
    %v476 = vunpack.c.l.b16 %v378
    %v477 = vunpack.c.h.b16 %v378
    %v478 = vunpack.c.l.b16 %v379
    %v479 = vunpack.c.h.b16 %v379
    %v480 = vunpack.c.l.b16 %v380
    %v481 = vunpack.c.h.b16 %v380
    %v482 = vunpack.c.l.b16 %v381
    %v483 = vunpack.c.h.b16 %v381
    %v484 = vunpack.c.l.b16 %v382
    %v485 = vunpack.c.h.b16 %v382
    %v486 = vunpack.c.l.b16 %v383
    %v487 = vunpack.c.h.b16 %v383
    %v488 = vunpack.c.l.b16 %v384
    %v489 = vunpack.c.h.b16 %v384
    %v490 = vunpack.c.l.b16 %v385
    %v491 = vunpack.c.h.b16 %v385
    %v492 = vpack.c.b16 %v432, %v428
    %v493 = vpack.c.b16 %v433, %v429
    %v494 = vpack.c.b16 %v434, %v430
    %v495 = vpack.c.b16 %v435, %v431
    %v496 = vpack.c.b16 %v440, %v436
    %v497 = vpack.c.b16 %v441, %v437
    %v498 = vpack.c.b16 %v442, %v438
    %v499 = vpack.c.b16 %v443, %v439
    %v500 = vpack.c.b16 %v448, %v444
    %v501 = vpack.c.b16 %v449, %v445
    %v502 = vpack.c.b16 %v450, %v446
    %v503 = vpack.c.b16 %v451, %v447
    %v504 = vpack.c.b16 %v456, %v452
    %v505 = vpack.c.b16 %v457, %v453
    %v506 = vpack.c.b16 %v458, %v454
    %v507 = vpack.c.b16 %v459, %v455
    %v508 = vpack.c.b16 %v464, %v460
    %v509 = vpack.c.b16 %v465, %v461
    %v510 = vpack.c.b16 %v466, %v462
    %v511 = vpack.c.b16 %v467, %v463
    %v512 = vpack.c.b16 %v472, %v468
    %v513 = vpack.c.b16 %v473, %v469
    %v514 = vpack.c.b16 %v474, %v470
    %v515 = vpack.c.b16 %v475, %v471
    %v516 = vpack.c.b16 %v480, %v476
    %v517 = vpack.c.b16 %v481, %v477
    %v518 = vpack.c.b16 %v482, %v478
    %v519 = vpack.c.b16 %v483, %v479
    %v520 = vpack.c.b16 %v488, %v484
    %v521 = vpack.c.b16 %v489, %v485
    %v522 = vpack.c.b16 %v490, %v486
    %v523 = vpack.c.b16 %v491, %v487
    %556 = vmatpush.bf16.msra.mxu0 %v520
    %557 = vmatpush.bf16.msra.mxu0 %v516
    %558 = vmatpush.bf16.msra.mxu0 %v512
    %559 = vmatpush.bf16.msra.mxu0 %v508
    %560 = vmatpush.bf16.msra.mxu0 %v504
    %561 = vmatpush.bf16.msra.mxu0 %v500
    %562 = vmatpush.bf16.msra.mxu0 %v496
    %563 = vmatpush.bf16.msra.mxu0 %v492
    %564 = vmatmul.bf16.gmra.mxu0 %v395
    %v565 = vpop.f32.mrf.mxu0
    %v566 = vadd.f32 0.0, %v565
    %v567 = vpop.f32.mrf.mxu0
    %568 = vdwg.mxu0
    %569 = vmatpush.bf16.msra.mxu0 %v521
    %570 = vmatpush.bf16.msra.mxu0 %v517
    %571 = vmatpush.bf16.msra.mxu0 %v513
    %572 = vmatpush.bf16.msra.mxu0 %v509
    %573 = vmatpush.bf16.msra.mxu0 %v505
    %574 = vmatpush.bf16.msra.mxu0 %v501
    %575 = vmatpush.bf16.msra.mxu0 %v497
    %576 = vmatpush.bf16.msra.mxu0 %v493
    %577 = vmatmul.bf16.gmra.mxu0 %v395
    %v578 = vpop.f32.mrf.mxu0
    %v579 = vadd.f32 0.0, %v578
    %v580 = vpop.f32.mrf.mxu0
    %581 = vdwg.mxu0
    %582 = vmatpush.bf16.msra.mxu0 %v522
    %583 = vmatpush.bf16.msra.mxu0 %v518
    %584 = vmatpush.bf16.msra.mxu0 %v514
    %585 = vmatpush.bf16.msra.mxu0 %v510
    %586 = vmatpush.bf16.msra.mxu0 %v506
    %587 = vmatpush.bf16.msra.mxu0 %v502
    %588 = vmatpush.bf16.msra.mxu0 %v498
    %589 = vmatpush.bf16.msra.mxu0 %v494
    %590 = vmatmul.bf16.gmra.mxu0 %v395
    %v591 = vpop.f32.mrf.mxu0
    %v592 = vadd.f32 0.0, %v591
    %v593 = vpop.f32.mrf.mxu0
    %594 = vdwg.mxu0
    %595 = vmatpush.bf16.msra.mxu0 %v523
    %596 = vmatpush.bf16.msra.mxu0 %v519
    %597 = vmatpush.bf16.msra.mxu0 %v515
    %598 = vmatpush.bf16.msra.mxu0 %v511
    %599 = vmatpush.bf16.msra.mxu0 %v507
    %600 = vmatpush.bf16.msra.mxu0 %v503
    %601 = vmatpush.bf16.msra.mxu0 %v499
    %602 = vmatpush.bf16.msra.mxu0 %v495
    %603 = vmatmul.bf16.gmra.mxu0 %v395
    %v604 = vpop.f32.mrf.mxu0
    %v605 = vadd.f32 0.0, %v604
    %v606 = vpop.f32.mrf.mxu0
    %607 = vdwg.mxu0
    %v608 = vadd.f32 %v391, %v566
    %v609 = vadd.f32 %v392, %v579
    %v610 = vadd.f32 %v393, %v592
    %v611 = vadd.f32 %v394, %v605
    %v612 = vxor.u32 %v608, 2147483648
    %v613 = vmul.f32 %v612, 1.442695
    %v614 = vpow.pop %v613
    %v615 = vadd.f32 %v614, 1.0
    %v616 = vrcp.pop %v615
    %v617 = vmul.f32 %v615, %v616
    %v618 = vsub.f32 1.0, %v617
    %v619 = vmul.f32 %v616, %v618
    %v620 = vadd.f32 %v616, %v619
    %vm621 = vweird.f32 %v615
    %vm622 = vweird.f32 %v616
    %vm623 = vmor %vm621, %vm622
    %v624 = vsel %vm623, %v616, %v620
    %v625 = vand.u32 2147483647, %v615
    %vm626 = vcmp.eq.f32.partialorder %v625, 8.507059e+37
    %v627 = vand.u32 %v615, 2147483648
    %v628 = vor.u32 1.1754944e-38, %v627
    %v629 = vsel %vm626, %v628, %v624
    %v630 = vmul.f32 1.0, %v629
    %v631 = vxor.u32 %v609, 2147483648
    %v632 = vmul.f32 %v631, 1.442695
    %v633 = vpow.pop %v632
    %v634 = vadd.f32 %v633, 1.0
    %v635 = vrcp.pop %v634
    %v636 = vmul.f32 %v634, %v635
    %v637 = vsub.f32 1.0, %v636
    %v638 = vmul.f32 %v635, %v637
    %v639 = vadd.f32 %v635, %v638
    %vm640 = vweird.f32 %v634
    %vm641 = vweird.f32 %v635
    %vm642 = vmor %vm640, %vm641
    %v643 = vsel %vm642, %v635, %v639
    %v644 = vand.u32 2147483647, %v634
    %vm645 = vcmp.eq.f32.partialorder %v644, 8.507059e+37
    %v646 = vand.u32 %v634, 2147483648
    %v647 = vor.u32 1.1754944e-38, %v646
    %v648 = vsel %vm645, %v647, %v643
    %v649 = vmul.f32 1.0, %v648
    %v650 = vtanh.pop %v610
    %v651 = vxor.u32 %v611, 2147483648
    %v652 = vmul.f32 %v651, 1.442695
    %v653 = vpow.pop %v652
    %v654 = vadd.f32 %v653, 1.0
    %v655 = vrcp.pop %v654
    %v656 = vmul.f32 %v654, %v655
    %v657 = vsub.f32 1.0, %v656
    %v658 = vmul.f32 %v655, %v657
    %v659 = vadd.f32 %v655, %v658
    %vm660 = vweird.f32 %v654
    %vm661 = vweird.f32 %v655
    %vm662 = vmor %vm660, %vm661
    %v663 = vsel %vm662, %v655, %v659
    %v664 = vand.u32 2147483647, %v654
    %vm665 = vcmp.eq.f32.partialorder %v664, 8.507059e+37
    %v666 = vand.u32 %v654, 2147483648
    %v667 = vor.u32 1.1754944e-38, %v666
    %v668 = vsel %vm665, %v667, %v663
    %v669 = vmul.f32 1.0, %v668
    %v670 = vmul.f32 %v649, %v387
    %v671 = vmul.f32 %v630, %v650
    %v672 = vadd.f32 %v670, %v671
    %v673 = vtanh.pop %v672
    %v674 = vmul.f32 %v669, %v673
    %675 = vst [vmem:[%s6] sm:$0xff] %v674
    %s676 = smul.u32 1, 4
    %s677 = smul.addr %s676, 8
    %s678 = scalar_lea.vmem [#allocation4], %s677
    %v679 = vld [vmem:[%s678] sm:$0xff]
    %v680 = vld [vmem:[%s678 + $0x8] sm:$0xff]
    %v681 = vld [vmem:[%s678 + $0x10] sm:$0xff]
    %v682 = vld [vmem:[%s678 + $0x18] sm:$0xff]
    %v683 = vpack.c.bf16 %v674, %v674
    %684 = vmatpush.bf16.msra.mxu0 %v520
    %685 = vmatpush.bf16.msra.mxu0 %v516
    %686 = vmatpush.bf16.msra.mxu0 %v512
    %687 = vmatpush.bf16.msra.mxu0 %v508
    %688 = vmatpush.bf16.msra.mxu0 %v504
    %689 = vmatpush.bf16.msra.mxu0 %v500
    %690 = vmatpush.bf16.msra.mxu0 %v496
    %691 = vmatpush.bf16.msra.mxu0 %v492
    %692 = vmatmul.bf16.gmra.mxu0 %v683
    %v693 = vpop.f32.mrf.mxu0
    %v694 = vadd.f32 0.0, %v693
    %v695 = vpop.f32.mrf.mxu0
    %696 = vdwg.mxu0
    %697 = vmatpush.bf16.msra.mxu0 %v521
    %698 = vmatpush.bf16.msra.mxu0 %v517
    %699 = vmatpush.bf16.msra.mxu0 %v513
    %700 = vmatpush.bf16.msra.mxu0 %v509
    %701 = vmatpush.bf16.msra.mxu0 %v505
    %702 = vmatpush.bf16.msra.mxu0 %v501
    %703 = vmatpush.bf16.msra.mxu0 %v497
    %704 = vmatpush.bf16.msra.mxu0 %v493
    %705 = vmatmul.bf16.gmra.mxu0 %v683
    %v706 = vpop.f32.mrf.mxu0
    %v707 = vadd.f32 0.0, %v706
    %v708 = vpop.f32.mrf.mxu0
    %709 = vdwg.mxu0
    %710 = vmatpush.bf16.msra.mxu0 %v522
    %711 = vmatpush.bf16.msra.mxu0 %v518
    %712 = vmatpush.bf16.msra.mxu0 %v514
    %713 = vmatpush.bf16.msra.mxu0 %v510
    %714 = vmatpush.bf16.msra.mxu0 %v506
    %715 = vmatpush.bf16.msra.mxu0 %v502
    %716 = vmatpush.bf16.msra.mxu0 %v498
    %717 = vmatpush.bf16.msra.mxu0 %v494
    %718 = vmatmul.bf16.gmra.mxu0 %v683
    %v719 = vpop.f32.mrf.mxu0
    %v720 = vadd.f32 0.0, %v719
    %v721 = vpop.f32.mrf.mxu0
    %722 = vdwg.mxu0
    %723 = vmatpush.bf16.msra.mxu0 %v523
    %724 = vmatpush.bf16.msra.mxu0 %v519
    %725 = vmatpush.bf16.msra.mxu0 %v515
    %726 = vmatpush.bf16.msra.mxu0 %v511
    %727 = vmatpush.bf16.msra.mxu0 %v507
    %728 = vmatpush.bf16.msra.mxu0 %v503
    %729 = vmatpush.bf16.msra.mxu0 %v499
    %730 = vmatpush.bf16.msra.mxu0 %v495
    %731 = vmatmul.bf16.gmra.mxu0 %v683
    %v732 = vpop.f32.mrf.mxu0
    %v733 = vadd.f32 0.0, %v732
    %v734 = vpop.f32.mrf.mxu0
    %735 = vdwg.mxu0
    %v736 = vadd.f32 %v679, %v694
    %v737 = vadd.f32 %v680, %v707
    %v738 = vadd.f32 %v681, %v720
    %v739 = vadd.f32 %v682, %v733
    %v740 = vxor.u32 %v736, 2147483648
    %v741 = vmul.f32 %v740, 1.442695
    %v742 = vpow.pop %v741
    %v743 = vadd.f32 %v742, 1.0
    %v744 = vrcp.pop %v743
    %v745 = vmul.f32 %v743, %v744
    %v746 = vsub.f32 1.0, %v745
    %v747 = vmul.f32 %v744, %v746
    %v748 = vadd.f32 %v744, %v747
    %vm749 = vweird.f32 %v743
    %vm750 = vweird.f32 %v744
    %vm751 = vmor %vm749, %vm750
    %v752 = vsel %vm751, %v744, %v748
    %v753 = vand.u32 2147483647, %v743
    %vm754 = vcmp.eq.f32.partialorder %v753, 8.507059e+37
    %v755 = vand.u32 %v743, 2147483648
    %v756 = vor.u32 1.1754944e-38, %v755
    %v757 = vsel %vm754, %v756, %v752
    %v758 = vmul.f32 1.0, %v757
    %v759 = vxor.u32 %v737, 2147483648
    %v760 = vmul.f32 %v759, 1.442695
    %v761 = vpow.pop %v760
    %v762 = vadd.f32 %v761, 1.0
    %v763 = vrcp.pop %v762
    %v764 = vmul.f32 %v762, %v763
    %v765 = vsub.f32 1.0, %v764
    %v766 = vmul.f32 %v763, %v765
    %v767 = vadd.f32 %v763, %v766
    %vm768 = vweird.f32 %v762
    %vm769 = vweird.f32 %v763
    %vm770 = vmor %vm768, %vm769
    %v771 = vsel %vm770, %v763, %v767
    %v772 = vand.u32 2147483647, %v762
    %vm773 = vcmp.eq.f32.partialorder %v772, 8.507059e+37
    %v774 = vand.u32 %v762, 2147483648
    %v775 = vor.u32 1.1754944e-38, %v774
    %v776 = vsel %vm773, %v775, %v771
    %v777 = vmul.f32 1.0, %v776
    %v778 = vtanh.pop %v738
    %v779 = vxor.u32 %v739, 2147483648
    %v780 = vmul.f32 %v779, 1.442695
    %v781 = vpow.pop %v780
    %v782 = vadd.f32 %v781, 1.0
    %v783 = vrcp.pop %v782
    %v784 = vmul.f32 %v782, %v783
    %v785 = vsub.f32 1.0, %v784
    %v786 = vmul.f32 %v783, %v785
    %v787 = vadd.f32 %v783, %v786
    %vm788 = vweird.f32 %v782
    %vm789 = vweird.f32 %v783
    %vm790 = vmor %vm788, %vm789
    %v791 = vsel %vm790, %v783, %v787
    %v792 = vand.u32 2147483647, %v782
    %vm793 = vcmp.eq.f32.partialorder %v792, 8.507059e+37
    %v794 = vand.u32 %v782, 2147483648
    %v795 = vor.u32 1.1754944e-38, %v794
    %v796 = vsel %vm793, %v795, %v791
    %v797 = vmul.f32 1.0, %v796
    %v798 = vmul.f32 %v777, %v672
    %v799 = vmul.f32 %v758, %v778
    %v800 = vadd.f32 %v798, %v799
    %v801 = vtanh.pop %v800
    %v802 = vmul.f32 %v797, %v801
    %s803 = scalar_lea.vmem %s6, 8
    %804 = vst [vmem:[%s803] sm:$0xff] %v802
    %s805 = smul.u32 2, 4
    %s806 = smul.addr %s805, 8
    %s807 = scalar_lea.vmem [#allocation4], %s806
    %v808 = vld [vmem:[%s807] sm:$0xff]
    %v809 = vld [vmem:[%s807 + $0x8] sm:$0xff]
    %v810 = vld [vmem:[%s807 + $0x10] sm:$0xff]
    %v811 = vld [vmem:[%s807 + $0x18] sm:$0xff]
    %v812 = vpack.c.bf16 %v802, %v802
    %813 = vmatpush.bf16.msra.mxu0 %v520
    %814 = vmatpush.bf16.msra.mxu0 %v516
    %815 = vmatpush.bf16.msra.mxu0 %v512
    %816 = vmatpush.bf16.msra.mxu0 %v508
    %817 = vmatpush.bf16.msra.mxu0 %v504
    %818 = vmatpush.bf16.msra.mxu0 %v500
    %819 = vmatpush.bf16.msra.mxu0 %v496
    %820 = vmatpush.bf16.msra.mxu0 %v492
    %821 = vmatmul.bf16.gmra.mxu0 %v812
    %v822 = vpop.f32.mrf.mxu0
    %v823 = vadd.f32 0.0, %v822
    %v824 = vpop.f32.mrf.mxu0
    %825 = vdwg.mxu0
    %826 = vmatpush.bf16.msra.mxu0 %v521
    %827 = vmatpush.bf16.msra.mxu0 %v517
    %828 = vmatpush.bf16.msra.mxu0 %v513
    %829 = vmatpush.bf16.msra.mxu0 %v509
    %830 = vmatpush.bf16.msra.mxu0 %v505
    %831 = vmatpush.bf16.msra.mxu0 %v501
    %832 = vmatpush.bf16.msra.mxu0 %v497
    %833 = vmatpush.bf16.msra.mxu0 %v493
    %834 = vmatmul.bf16.gmra.mxu0 %v812
    %v835 = vpop.f32.mrf.mxu0
    %v836 = vadd.f32 0.0, %v835
    %v837 = vpop.f32.mrf.mxu0
    %838 = vdwg.mxu0
    %839 = vmatpush.bf16.msra.mxu0 %v522
    %840 = vmatpush.bf16.msra.mxu0 %v518
    %841 = vmatpush.bf16.msra.mxu0 %v514
    %842 = vmatpush.bf16.msra.mxu0 %v510
    %843 = vmatpush.bf16.msra.mxu0 %v506
    %844 = vmatpush.bf16.msra.mxu0 %v502
    %845 = vmatpush.bf16.msra.mxu0 %v498
    %846 = vmatpush.bf16.msra.mxu0 %v494
    %847 = vmatmul.bf16.gmra.mxu0 %v812
    %v848 = vpop.f32.mrf.mxu0
    %v849 = vadd.f32 0.0, %v848
    %v850 = vpop.f32.mrf.mxu0
    %851 = vdwg.mxu0
    %852 = vmatpush.bf16.msra.mxu0 %v523
    %853 = vmatpush.bf16.msra.mxu0 %v519
    %854 = vmatpush.bf16.msra.mxu0 %v515
    %855 = vmatpush.bf16.msra.mxu0 %v511
    %856 = vmatpush.bf16.msra.mxu0 %v507
    %857 = vmatpush.bf16.msra.mxu0 %v503
    %858 = vmatpush.bf16.msra.mxu0 %v499
    %859 = vmatpush.bf16.msra.mxu0 %v495
    %860 = vmatmul.bf16.gmra.mxu0 %v812
    %v861 = vpop.f32.mrf.mxu0
    %v862 = vadd.f32 0.0, %v861
    %v863 = vpop.f32.mrf.mxu0
    %864 = vdwg.mxu0
    %v865 = vadd.f32 %v808, %v823
    %v866 = vadd.f32 %v809, %v836
    %v867 = vadd.f32 %v810, %v849
    %v868 = vadd.f32 %v811, %v862
    %v869 = vxor.u32 %v865, 2147483648
    %v870 = vmul.f32 %v869, 1.442695
    %v871 = vpow.pop %v870
    %v872 = vadd.f32 %v871, 1.0
    %v873 = vrcp.pop %v872
    %v874 = vmul.f32 %v872, %v873
    %v875 = vsub.f32 1.0, %v874
    %v876 = vmul.f32 %v873, %v875
    %v877 = vadd.f32 %v873, %v876
    %vm878 = vweird.f32 %v872
    %vm879 = vweird.f32 %v873
    %vm880 = vmor %vm878, %vm879
    %v881 = vsel %vm880, %v873, %v877
    %v882 = vand.u32 2147483647, %v872
    %vm883 = vcmp.eq.f32.partialorder %v882, 8.507059e+37
    %v884 = vand.u32 %v872, 2147483648
    %v885 = vor.u32 1.1754944e-38, %v884
    %v886 = vsel %vm883, %v885, %v881
    %v887 = vmul.f32 1.0, %v886
    %v888 = vxor.u32 %v866, 2147483648
    %v889 = vmul.f32 %v888, 1.442695
    %v890 = vpow.pop %v889
    %v891 = vadd.f32 %v890, 1.0
    %v892 = vrcp.pop %v891
    %v893 = vmul.f32 %v891, %v892
    %v894 = vsub.f32 1.0, %v893
    %v895 = vmul.f32 %v892, %v894
    %v896 = vadd.f32 %v892, %v895
    %vm897 = vweird.f32 %v891
    %vm898 = vweird.f32 %v892
    %vm899 = vmor %vm897, %vm898
    %v900 = vsel %vm899, %v892, %v896
    %v901 = vand.u32 2147483647, %v891
    %vm902 = vcmp.eq.f32.partialorder %v901, 8.507059e+37
    %v903 = vand.u32 %v891, 2147483648
    %v904 = vor.u32 1.1754944e-38, %v903
    %v905 = vsel %vm902, %v904, %v900
    %v906 = vmul.f32 1.0, %v905
    %v907 = vtanh.pop %v867
    %v908 = vxor.u32 %v868, 2147483648
    %v909 = vmul.f32 %v908, 1.442695
    %v910 = vpow.pop %v909
    %v911 = vadd.f32 %v910, 1.0
    %v912 = vrcp.pop %v911
    %v913 = vmul.f32 %v911, %v912
    %v914 = vsub.f32 1.0, %v913
    %v915 = vmul.f32 %v912, %v914
    %v916 = vadd.f32 %v912, %v915
    %vm917 = vweird.f32 %v911
    %vm918 = vweird.f32 %v912
    %vm919 = vmor %vm917, %vm918
    %v920 = vsel %vm919, %v912, %v916
    %v921 = vand.u32 2147483647, %v911
    %vm922 = vcmp.eq.f32.partialorder %v921, 8.507059e+37
    %v923 = vand.u32 %v911, 2147483648
    %v924 = vor.u32 1.1754944e-38, %v923
    %v925 = vsel %vm922, %v924, %v920
    %v926 = vmul.f32 1.0, %v925
    %v927 = vmul.f32 %v906, %v800
    %v928 = vmul.f32 %v887, %v907
    %v929 = vadd.f32 %v927, %v928
    %v930 = vtanh.pop %v929
    %v931 = vmul.f32 %v926, %v930
    %s932 = scalar_lea.vmem %s6, 16
    %933 = vst [vmem:[%s932] sm:$0xff] %v931
    %s934 = smul.u32 3, 4
    %s935 = smul.addr %s934, 8
    %s936 = scalar_lea.vmem [#allocation4], %s935
    %v937 = vld [vmem:[%s936] sm:$0xff]
    %v938 = vld [vmem:[%s936 + $0x8] sm:$0xff]
    %v939 = vld [vmem:[%s936 + $0x10] sm:$0xff]
    %v940 = vld [vmem:[%s936 + $0x18] sm:$0xff]
    %v941 = vpack.c.bf16 %v931, %v931
    %942 = vmatpush.bf16.msra.mxu0 %v520
    %943 = vmatpush.bf16.msra.mxu0 %v516
    %944 = vmatpush.bf16.msra.mxu0 %v512
    %945 = vmatpush.bf16.msra.mxu0 %v508
    %946 = vmatpush.bf16.msra.mxu0 %v504
    %947 = vmatpush.bf16.msra.mxu0 %v500
    %948 = vmatpush.bf16.msra.mxu0 %v496
    %949 = vmatpush.bf16.msra.mxu0 %v492
    %950 = vmatmul.bf16.gmra.mxu0 %v941
    %v951 = vpop.f32.mrf.mxu0
    %v952 = vadd.f32 0.0, %v951
    %v953 = vpop.f32.mrf.mxu0
    %954 = vdwg.mxu0
    %955 = vmatpush.bf16.msra.mxu0 %v521
    %956 = vmatpush.bf16.msra.mxu0 %v517
    %957 = vmatpush.bf16.msra.mxu0 %v513
    %958 = vmatpush.bf16.msra.mxu0 %v509
    %959 = vmatpush.bf16.msra.mxu0 %v505
    %960 = vmatpush.bf16.msra.mxu0 %v501
    %961 = vmatpush.bf16.msra.mxu0 %v497
    %962 = vmatpush.bf16.msra.mxu0 %v493
    %963 = vmatmul.bf16.gmra.mxu0 %v941
    %v964 = vpop.f32.mrf.mxu0
    %v965 = vadd.f32 0.0, %v964
    %v966 = vpop.f32.mrf.mxu0
    %967 = vdwg.mxu0
    %968 = vmatpush.bf16.msra.mxu0 %v522
    %969 = vmatpush.bf16.msra.mxu0 %v518
    %970 = vmatpush.bf16.msra.mxu0 %v514
    %971 = vmatpush.bf16.msra.mxu0 %v510
    %972 = vmatpush.bf16.msra.mxu0 %v506
    %973 = vmatpush.bf16.msra.mxu0 %v502
    %974 = vmatpush.bf16.msra.mxu0 %v498
    %975 = vmatpush.bf16.msra.mxu0 %v494
    %976 = vmatmul.bf16.gmra.mxu0 %v941
    %v977 = vpop.f32.mrf.mxu0
    %v978 = vadd.f32 0.0, %v977
    %v979 = vpop.f32.mrf.mxu0
    %980 = vdwg.mxu0
    %981 = vmatpush.bf16.msra.mxu0 %v523
    %982 = vmatpush.bf16.msra.mxu0 %v519
    %983 = vmatpush.bf16.msra.mxu0 %v515
    %984 = vmatpush.bf16.msra.mxu0 %v511
    %985 = vmatpush.bf16.msra.mxu0 %v507
    %986 = vmatpush.bf16.msra.mxu0 %v503
    %987 = vmatpush.bf16.msra.mxu0 %v499
    %988 = vmatpush.bf16.msra.mxu0 %v495
    %989 = vmatmul.bf16.gmra.mxu0 %v941
    %v990 = vpop.f32.mrf.mxu0
    %v991 = vadd.f32 0.0, %v990
    %v992 = vpop.f32.mrf.mxu0
    %993 = vdwg.mxu0
    %v994 = vadd.f32 %v937, %v952
    %v995 = vadd.f32 %v938, %v965
    %v996 = vadd.f32 %v939, %v978
    %v997 = vadd.f32 %v940, %v991
    %v998 = vxor.u32 %v994, 2147483648
    %v999 = vmul.f32 %v998, 1.442695
    %v1000 = vpow.pop %v999
    %v1001 = vadd.f32 %v1000, 1.0
    %v1002 = vrcp.pop %v1001
    %v1003 = vmul.f32 %v1001, %v1002
    %v1004 = vsub.f32 1.0, %v1003
    %v1005 = vmul.f32 %v1002, %v1004
    %v1006 = vadd.f32 %v1002, %v1005
    %vm1007 = vweird.f32 %v1001
    %vm1008 = vweird.f32 %v1002
    %vm1009 = vmor %vm1007, %vm1008
    %v1010 = vsel %vm1009, %v1002, %v1006
    %v1011 = vand.u32 2147483647, %v1001
    %vm1012 = vcmp.eq.f32.partialorder %v1011, 8.507059e+37
    %v1013 = vand.u32 %v1001, 2147483648
    %v1014 = vor.u32 1.1754944e-38, %v1013
    %v1015 = vsel %vm1012, %v1014, %v1010
    %v1016 = vmul.f32 1.0, %v1015
    %v1017 = vxor.u32 %v995, 2147483648
    %v1018 = vmul.f32 %v1017, 1.442695
    %v1019 = vpow.pop %v1018
    %v1020 = vadd.f32 %v1019, 1.0
    %v1021 = vrcp.pop %v1020
    %v1022 = vmul.f32 %v1020, %v1021
    %v1023 = vsub.f32 1.0, %v1022
    %v1024 = vmul.f32 %v1021, %v1023
    %v1025 = vadd.f32 %v1021, %v1024
    %vm1026 = vweird.f32 %v1020
    %vm1027 = vweird.f32 %v1021
    %vm1028 = vmor %vm1026, %vm1027
    %v1029 = vsel %vm1028, %v1021, %v1025
    %v1030 = vand.u32 2147483647, %v1020
    %vm1031 = vcmp.eq.f32.partialorder %v1030, 8.507059e+37
    %v1032 = vand.u32 %v1020, 2147483648
    %v1033 = vor.u32 1.1754944e-38, %v1032
    %v1034 = vsel %vm1031, %v1033, %v1029
    %v1035 = vmul.f32 1.0, %v1034
    %v1036 = vtanh.pop %v996
    %v1037 = vxor.u32 %v997, 2147483648
    %v1038 = vmul.f32 %v1037, 1.442695
    %v1039 = vpow.pop %v1038
    %v1040 = vadd.f32 %v1039, 1.0
    %v1041 = vrcp.pop %v1040
    %v1042 = vmul.f32 %v1040, %v1041
    %v1043 = vsub.f32 1.0, %v1042
    %v1044 = vmul.f32 %v1041, %v1043
    %v1045 = vadd.f32 %v1041, %v1044
    %vm1046 = vweird.f32 %v1040
    %vm1047 = vweird.f32 %v1041
    %vm1048 = vmor %vm1046, %vm1047
    %v1049 = vsel %vm1048, %v1041, %v1045
    %v1050 = vand.u32 2147483647, %v1040
    %vm1051 = vcmp.eq.f32.partialorder %v1050, 8.507059e+37
    %v1052 = vand.u32 %v1040, 2147483648
    %v1053 = vor.u32 1.1754944e-38, %v1052
    %v1054 = vsel %vm1051, %v1053, %v1049
    %v1055 = vmul.f32 1.0, %v1054
    %v1056 = vmul.f32 %v1035, %v929
    %v1057 = vmul.f32 %v1016, %v1036
    %v1058 = vadd.f32 %v1056, %v1057
    %v1059 = vtanh.pop %v1058
    %v1060 = vmul.f32 %v1055, %v1059
    %s1061 = scalar_lea.vmem %s6, 24
    %1062 = vst [vmem:[%s1061] sm:$0xff] %v1060
    %s1063 = smul.u32 4, 4
    %s1064 = smul.addr %s1063, 8
    %s1065 = scalar_lea.vmem [#allocation4], %s1064
    %v1066 = vld [vmem:[%s1065] sm:$0xff]
    %v1067 = vld [vmem:[%s1065 + $0x8] sm:$0xff]
    %v1068 = vld [vmem:[%s1065 + $0x10] sm:$0xff]
    %v1069 = vld [vmem:[%s1065 + $0x18] sm:$0xff]
    %v1070 = vpack.c.bf16 %v1060, %v1060
    %1071 = vmatpush.bf16.msra.mxu0 %v520
    %1072 = vmatpush.bf16.msra.mxu0 %v516
    %1073 = vmatpush.bf16.msra.mxu0 %v512
    %1074 = vmatpush.bf16.msra.mxu0 %v508
    %1075 = vmatpush.bf16.msra.mxu0 %v504
    %1076 = vmatpush.bf16.msra.mxu0 %v500
    %1077 = vmatpush.bf16.msra.mxu0 %v496
    %1078 = vmatpush.bf16.msra.mxu0 %v492
    %1079 = vmatmul.bf16.gmra.mxu0 %v1070
    %v1080 = vpop.f32.mrf.mxu0
    %v1081 = vadd.f32 0.0, %v1080
    %v1082 = vpop.f32.mrf.mxu0
    %1083 = vdwg.mxu0
    %1084 = vmatpush.bf16.msra.mxu0 %v521
    %1085 = vmatpush.bf16.msra.mxu0 %v517
    %1086 = vmatpush.bf16.msra.mxu0 %v513
    %1087 = vmatpush.bf16.msra.mxu0 %v509
    %1088 = vmatpush.bf16.msra.mxu0 %v505
    %1089 = vmatpush.bf16.msra.mxu0 %v501
    %1090 = vmatpush.bf16.msra.mxu0 %v497
    %1091 = vmatpush.bf16.msra.mxu0 %v493
    %1092 = vmatmul.bf16.gmra.mxu0 %v1070
    %v1093 = vpop.f32.mrf.mxu0
    %v1094 = vadd.f32 0.0, %v1093
    %v1095 = vpop.f32.mrf.mxu0
    %1096 = vdwg.mxu0
    %1097 = vmatpush.bf16.msra.mxu0 %v522
    %1098 = vmatpush.bf16.msra.mxu0 %v518
    %1099 = vmatpush.bf16.msra.mxu0 %v514
    %1100 = vmatpush.bf16.msra.mxu0 %v510
    %1101 = vmatpush.bf16.msra.mxu0 %v506
    %1102 = vmatpush.bf16.msra.mxu0 %v502
    %1103 = vmatpush.bf16.msra.mxu0 %v498
    %1104 = vmatpush.bf16.msra.mxu0 %v494
    %1105 = vmatmul.bf16.gmra.mxu0 %v1070
    %v1106 = vpop.f32.mrf.mxu0
    %v1107 = vadd.f32 0.0, %v1106
    %v1108 = vpop.f32.mrf.mxu0
    %1109 = vdwg.mxu0
    %1110 = vmatpush.bf16.msra.mxu0 %v523
    %1111 = vmatpush.bf16.msra.mxu0 %v519
    %1112 = vmatpush.bf16.msra.mxu0 %v515
    %1113 = vmatpush.bf16.msra.mxu0 %v511
    %1114 = vmatpush.bf16.msra.mxu0 %v507
    %1115 = vmatpush.bf16.msra.mxu0 %v503
    %1116 = vmatpush.bf16.msra.mxu0 %v499
    %1117 = vmatpush.bf16.msra.mxu0 %v495
    %1118 = vmatmul.bf16.gmra.mxu0 %v1070
    %v1119 = vpop.f32.mrf.mxu0
    %v1120 = vadd.f32 0.0, %v1119
    %v1121 = vpop.f32.mrf.mxu0
    %1122 = vdwg.mxu0
    %v1123 = vadd.f32 %v1066, %v1081
    %v1124 = vadd.f32 %v1067, %v1094
    %v1125 = vadd.f32 %v1068, %v1107
    %v1126 = vadd.f32 %v1069, %v1120
    %v1127 = vxor.u32 %v1123, 2147483648
    %v1128 = vmul.f32 %v1127, 1.442695
    %v1129 = vpow.pop %v1128
    %v1130 = vadd.f32 %v1129, 1.0
    %v1131 = vrcp.pop %v1130
    %v1132 = vmul.f32 %v1130, %v1131
    %v1133 = vsub.f32 1.0, %v1132
    %v1134 = vmul.f32 %v1131, %v1133
    %v1135 = vadd.f32 %v1131, %v1134
    %vm1136 = vweird.f32 %v1130
    %vm1137 = vweird.f32 %v1131
    %vm1138 = vmor %vm1136, %vm1137
    %v1139 = vsel %vm1138, %v1131, %v1135
    %v1140 = vand.u32 2147483647, %v1130
    %vm1141 = vcmp.eq.f32.partialorder %v1140, 8.507059e+37
    %v1142 = vand.u32 %v1130, 2147483648
    %v1143 = vor.u32 1.1754944e-38, %v1142
    %v1144 = vsel %vm1141, %v1143, %v1139
    %v1145 = vmul.f32 1.0, %v1144
    %v1146 = vxor.u32 %v1124, 2147483648
    %v1147 = vmul.f32 %v1146, 1.442695
    %v1148 = vpow.pop %v1147
    %v1149 = vadd.f32 %v1148, 1.0
    %v1150 = vrcp.pop %v1149
    %v1151 = vmul.f32 %v1149, %v1150
    %v1152 = vsub.f32 1.0, %v1151
    %v1153 = vmul.f32 %v1150, %v1152
    %v1154 = vadd.f32 %v1150, %v1153
    %vm1155 = vweird.f32 %v1149
    %vm1156 = vweird.f32 %v1150
    %vm1157 = vmor %vm1155, %vm1156
    %v1158 = vsel %vm1157, %v1150, %v1154
    %v1159 = vand.u32 2147483647, %v1149
    %vm1160 = vcmp.eq.f32.partialorder %v1159, 8.507059e+37
    %v1161 = vand.u32 %v1149, 2147483648
    %v1162 = vor.u32 1.1754944e-38, %v1161
    %v1163 = vsel %vm1160, %v1162, %v1158
    %v1164 = vmul.f32 1.0, %v1163
    %v1165 = vtanh.pop %v1125
    %v1166 = vxor.u32 %v1126, 2147483648
    %v1167 = vmul.f32 %v1166, 1.442695
    %v1168 = vpow.pop %v1167
    %v1169 = vadd.f32 %v1168, 1.0
    %v1170 = vrcp.pop %v1169
    %v1171 = vmul.f32 %v1169, %v1170
    %v1172 = vsub.f32 1.0, %v1171
    %v1173 = vmul.f32 %v1170, %v1172
    %v1174 = vadd.f32 %v1170, %v1173
    %vm1175 = vweird.f32 %v1169
    %vm1176 = vweird.f32 %v1170
    %vm1177 = vmor %vm1175, %vm1176
    %v1178 = vsel %vm1177, %v1170, %v1174
    %v1179 = vand.u32 2147483647, %v1169
    %vm1180 = vcmp.eq.f32.partialorder %v1179, 8.507059e+37
    %v1181 = vand.u32 %v1169, 2147483648
    %v1182 = vor.u32 1.1754944e-38, %v1181
    %v1183 = vsel %vm1180, %v1182, %v1178
    %v1184 = vmul.f32 1.0, %v1183
    %v1185 = vmul.f32 %v1164, %v1058
    %v1186 = vmul.f32 %v1145, %v1165
    %v1187 = vadd.f32 %v1185, %v1186
    %v1188 = vtanh.pop %v1187
    %v1189 = vmul.f32 %v1184, %v1188
    %s1190 = scalar_lea.vmem %s6, 32
    %1191 = vst [vmem:[%s1190] sm:$0xff] %v1189
    %s1192 = smul.u32 5, 4
    %s1193 = smul.addr %s1192, 8
    %s1194 = scalar_lea.vmem [#allocation4], %s1193
    %v1195 = vld [vmem:[%s1194] sm:$0xff]
    %v1196 = vld [vmem:[%s1194 + $0x8] sm:$0xff]
    %v1197 = vld [vmem:[%s1194 + $0x10] sm:$0xff]
    %v1198 = vld [vmem:[%s1194 + $0x18] sm:$0xff]
    %v1199 = vpack.c.bf16 %v1189, %v1189
    %1200 = vmatpush.bf16.msra.mxu0 %v520
    %1201 = vmatpush.bf16.msra.mxu0 %v516
    %1202 = vmatpush.bf16.msra.mxu0 %v512
    %1203 = vmatpush.bf16.msra.mxu0 %v508
    %1204 = vmatpush.bf16.msra.mxu0 %v504
    %1205 = vmatpush.bf16.msra.mxu0 %v500
    %1206 = vmatpush.bf16.msra.mxu0 %v496
    %1207 = vmatpush.bf16.msra.mxu0 %v492
    %1208 = vmatmul.bf16.gmra.mxu0 %v1199
    %v1209 = vpop.f32.mrf.mxu0
    %v1210 = vadd.f32 0.0, %v1209
    %v1211 = vpop.f32.mrf.mxu0
    %1212 = vdwg.mxu0
    %1213 = vmatpush.bf16.msra.mxu0 %v521
    %1214 = vmatpush.bf16.msra.mxu0 %v517
    %1215 = vmatpush.bf16.msra.mxu0 %v513
    %1216 = vmatpush.bf16.msra.mxu0 %v509
    %1217 = vmatpush.bf16.msra.mxu0 %v505
    %1218 = vmatpush.bf16.msra.mxu0 %v501
    %1219 = vmatpush.bf16.msra.mxu0 %v497
    %1220 = vmatpush.bf16.msra.mxu0 %v493
    %1221 = vmatmul.bf16.gmra.mxu0 %v1199
    %v1222 = vpop.f32.mrf.mxu0
    %v1223 = vadd.f32 0.0, %v1222
    %v1224 = vpop.f32.mrf.mxu0
    %1225 = vdwg.mxu0
    %1226 = vmatpush.bf16.msra.mxu0 %v522
    %1227 = vmatpush.bf16.msra.mxu0 %v518
    %1228 = vmatpush.bf16.msra.mxu0 %v514
    %1229 = vmatpush.bf16.msra.mxu0 %v510
    %1230 = vmatpush.bf16.msra.mxu0 %v506
    %1231 = vmatpush.bf16.msra.mxu0 %v502
    %1232 = vmatpush.bf16.msra.mxu0 %v498
    %1233 = vmatpush.bf16.msra.mxu0 %v494
    %1234 = vmatmul.bf16.gmra.mxu0 %v1199
    %v1235 = vpop.f32.mrf.mxu0
    %v1236 = vadd.f32 0.0, %v1235
    %v1237 = vpop.f32.mrf.mxu0
    %1238 = vdwg.mxu0
    %1239 = vmatpush.bf16.msra.mxu0 %v523
    %1240 = vmatpush.bf16.msra.mxu0 %v519
    %1241 = vmatpush.bf16.msra.mxu0 %v515
    %1242 = vmatpush.bf16.msra.mxu0 %v511
    %1243 = vmatpush.bf16.msra.mxu0 %v507
    %1244 = vmatpush.bf16.msra.mxu0 %v503
    %1245 = vmatpush.bf16.msra.mxu0 %v499
    %1246 = vmatpush.bf16.msra.mxu0 %v495
    %1247 = vmatmul.bf16.gmra.mxu0 %v1199
    %v1248 = vpop.f32.mrf.mxu0
    %v1249 = vadd.f32 0.0, %v1248
    %v1250 = vpop.f32.mrf.mxu0
    %1251 = vdwg.mxu0
    %v1252 = vadd.f32 %v1195, %v1210
    %v1253 = vadd.f32 %v1196, %v1223
    %v1254 = vadd.f32 %v1197, %v1236
    %v1255 = vadd.f32 %v1198, %v1249
    %v1256 = vxor.u32 %v1252, 2147483648
    %v1257 = vmul.f32 %v1256, 1.442695
    %v1258 = vpow.pop %v1257
    %v1259 = vadd.f32 %v1258, 1.0
    %v1260 = vrcp.pop %v1259
    %v1261 = vmul.f32 %v1259, %v1260
    %v1262 = vsub.f32 1.0, %v1261
    %v1263 = vmul.f32 %v1260, %v1262
    %v1264 = vadd.f32 %v1260, %v1263
    %vm1265 = vweird.f32 %v1259
    %vm1266 = vweird.f32 %v1260
    %vm1267 = vmor %vm1265, %vm1266
    %v1268 = vsel %vm1267, %v1260, %v1264
    %v1269 = vand.u32 2147483647, %v1259
    %vm1270 = vcmp.eq.f32.partialorder %v1269, 8.507059e+37
    %v1271 = vand.u32 %v1259, 2147483648
    %v1272 = vor.u32 1.1754944e-38, %v1271
    %v1273 = vsel %vm1270, %v1272, %v1268
    %v1274 = vmul.f32 1.0, %v1273
    %v1275 = vxor.u32 %v1253, 2147483648
    %v1276 = vmul.f32 %v1275, 1.442695
    %v1277 = vpow.pop %v1276
    %v1278 = vadd.f32 %v1277, 1.0
    %v1279 = vrcp.pop %v1278
    %v1280 = vmul.f32 %v1278, %v1279
    %v1281 = vsub.f32 1.0, %v1280
    %v1282 = vmul.f32 %v1279, %v1281
    %v1283 = vadd.f32 %v1279, %v1282
    %vm1284 = vweird.f32 %v1278
    %vm1285 = vweird.f32 %v1279
    %vm1286 = vmor %vm1284, %vm1285
    %v1287 = vsel %vm1286, %v1279, %v1283
    %v1288 = vand.u32 2147483647, %v1278
    %vm1289 = vcmp.eq.f32.partialorder %v1288, 8.507059e+37
    %v1290 = vand.u32 %v1278, 2147483648
    %v1291 = vor.u32 1.1754944e-38, %v1290
    %v1292 = vsel %vm1289, %v1291, %v1287
    %v1293 = vmul.f32 1.0, %v1292
    %v1294 = vtanh.pop %v1254
    %v1295 = vxor.u32 %v1255, 2147483648
    %v1296 = vmul.f32 %v1295, 1.442695
    %v1297 = vpow.pop %v1296
    %v1298 = vadd.f32 %v1297, 1.0
    %v1299 = vrcp.pop %v1298
    %v1300 = vmul.f32 %v1298, %v1299
    %v1301 = vsub.f32 1.0, %v1300
    %v1302 = vmul.f32 %v1299, %v1301
    %v1303 = vadd.f32 %v1299, %v1302
    %vm1304 = vweird.f32 %v1298
    %vm1305 = vweird.f32 %v1299
    %vm1306 = vmor %vm1304, %vm1305
    %v1307 = vsel %vm1306, %v1299, %v1303
    %v1308 = vand.u32 2147483647, %v1298
    %vm1309 = vcmp.eq.f32.partialorder %v1308, 8.507059e+37
    %v1310 = vand.u32 %v1298, 2147483648
    %v1311 = vor.u32 1.1754944e-38, %v1310
    %v1312 = vsel %vm1309, %v1311, %v1307
    %v1313 = vmul.f32 1.0, %v1312
    %v1314 = vmul.f32 %v1293, %v1187
    %v1315 = vmul.f32 %v1274, %v1294
    %v1316 = vadd.f32 %v1314, %v1315
    %v1317 = vtanh.pop %v1316
    %v1318 = vmul.f32 %v1313, %v1317
    %s1319 = scalar_lea.vmem %s6, 40
    %1320 = vst [vmem:[%s1319] sm:$0xff] %v1318
    %s1321 = smul.u32 6, 4
    %s1322 = smul.addr %s1321, 8
    %s1323 = scalar_lea.vmem [#allocation4], %s1322
    %v1324 = vld [vmem:[%s1323] sm:$0xff]
    %v1325 = vld [vmem:[%s1323 + $0x8] sm:$0xff]
    %v1326 = vld [vmem:[%s1323 + $0x10] sm:$0xff]
    %v1327 = vld [vmem:[%s1323 + $0x18] sm:$0xff]
    %v1328 = vpack.c.bf16 %v1318, %v1318
    %1329 = vmatpush.bf16.msra.mxu0 %v520
    %1330 = vmatpush.bf16.msra.mxu0 %v516
    %1331 = vmatpush.bf16.msra.mxu0 %v512
    %1332 = vmatpush.bf16.msra.mxu0 %v508
    %1333 = vmatpush.bf16.msra.mxu0 %v504
    %1334 = vmatpush.bf16.msra.mxu0 %v500
    %1335 = vmatpush.bf16.msra.mxu0 %v496
    %1336 = vmatpush.bf16.msra.mxu0 %v492
    %1337 = vmatmul.bf16.gmra.mxu0 %v1328
    %v1338 = vpop.f32.mrf.mxu0
    %v1339 = vadd.f32 0.0, %v1338
    %v1340 = vpop.f32.mrf.mxu0
    %1341 = vdwg.mxu0
    %1342 = vmatpush.bf16.msra.mxu0 %v521
    %1343 = vmatpush.bf16.msra.mxu0 %v517
    %1344 = vmatpush.bf16.msra.mxu0 %v513
    %1345 = vmatpush.bf16.msra.mxu0 %v509
    %1346 = vmatpush.bf16.msra.mxu0 %v505
    %1347 = vmatpush.bf16.msra.mxu0 %v501
    %1348 = vmatpush.bf16.msra.mxu0 %v497
    %1349 = vmatpush.bf16.msra.mxu0 %v493
    %1350 = vmatmul.bf16.gmra.mxu0 %v1328
    %v1351 = vpop.f32.mrf.mxu0
    %v1352 = vadd.f32 0.0, %v1351
    %v1353 = vpop.f32.mrf.mxu0
    %1354 = vdwg.mxu0
    %1355 = vmatpush.bf16.msra.mxu0 %v522
    %1356 = vmatpush.bf16.msra.mxu0 %v518
    %1357 = vmatpush.bf16.msra.mxu0 %v514
    %1358 = vmatpush.bf16.msra.mxu0 %v510
    %1359 = vmatpush.bf16.msra.mxu0 %v506
    %1360 = vmatpush.bf16.msra.mxu0 %v502
    %1361 = vmatpush.bf16.msra.mxu0 %v498
    %1362 = vmatpush.bf16.msra.mxu0 %v494
    %1363 = vmatmul.bf16.gmra.mxu0 %v1328
    %v1364 = vpop.f32.mrf.mxu0
    %v1365 = vadd.f32 0.0, %v1364
    %v1366 = vpop.f32.mrf.mxu0
    %1367 = vdwg.mxu0
    %1368 = vmatpush.bf16.msra.mxu0 %v523
    %1369 = vmatpush.bf16.msra.mxu0 %v519
    %1370 = vmatpush.bf16.msra.mxu0 %v515
    %1371 = vmatpush.bf16.msra.mxu0 %v511
    %1372 = vmatpush.bf16.msra.mxu0 %v507
    %1373 = vmatpush.bf16.msra.mxu0 %v503
    %1374 = vmatpush.bf16.msra.mxu0 %v499
    %1375 = vmatpush.bf16.msra.mxu0 %v495
    %1376 = vmatmul.bf16.gmra.mxu0 %v1328
    %v1377 = vpop.f32.mrf.mxu0
    %v1378 = vadd.f32 0.0, %v1377
    %v1379 = vpop.f32.mrf.mxu0
    %1380 = vdwg.mxu0
    %v1381 = vadd.f32 %v1324, %v1339
    %v1382 = vadd.f32 %v1325, %v1352
    %v1383 = vadd.f32 %v1326, %v1365
    %v1384 = vadd.f32 %v1327, %v1378
    %v1385 = vxor.u32 %v1381, 2147483648
    %v1386 = vmul.f32 %v1385, 1.442695
    %v1387 = vpow.pop %v1386
    %v1388 = vadd.f32 %v1387, 1.0
    %v1389 = vrcp.pop %v1388
    %v1390 = vmul.f32 %v1388, %v1389
    %v1391 = vsub.f32 1.0, %v1390
    %v1392 = vmul.f32 %v1389, %v1391
    %v1393 = vadd.f32 %v1389, %v1392
    %vm1394 = vweird.f32 %v1388
    %vm1395 = vweird.f32 %v1389
    %vm1396 = vmor %vm1394, %vm1395
    %v1397 = vsel %vm1396, %v1389, %v1393
    %v1398 = vand.u32 2147483647, %v1388
    %vm1399 = vcmp.eq.f32.partialorder %v1398, 8.507059e+37
    %v1400 = vand.u32 %v1388, 2147483648
    %v1401 = vor.u32 1.1754944e-38, %v1400
    %v1402 = vsel %vm1399, %v1401, %v1397
    %v1403 = vmul.f32 1.0, %v1402
    %v1404 = vxor.u32 %v1382, 2147483648
    %v1405 = vmul.f32 %v1404, 1.442695
    %v1406 = vpow.pop %v1405
    %v1407 = vadd.f32 %v1406, 1.0
    %v1408 = vrcp.pop %v1407
    %v1409 = vmul.f32 %v1407, %v1408
    %v1410 = vsub.f32 1.0, %v1409
    %v1411 = vmul.f32 %v1408, %v1410
    %v1412 = vadd.f32 %v1408, %v1411
    %vm1413 = vweird.f32 %v1407
    %vm1414 = vweird.f32 %v1408
    %vm1415 = vmor %vm1413, %vm1414
    %v1416 = vsel %vm1415, %v1408, %v1412
    %v1417 = vand.u32 2147483647, %v1407
    %vm1418 = vcmp.eq.f32.partialorder %v1417, 8.507059e+37
    %v1419 = vand.u32 %v1407, 2147483648
    %v1420 = vor.u32 1.1754944e-38, %v1419
    %v1421 = vsel %vm1418, %v1420, %v1416
    %v1422 = vmul.f32 1.0, %v1421
    %v1423 = vtanh.pop %v1383
    %v1424 = vxor.u32 %v1384, 2147483648
    %v1425 = vmul.f32 %v1424, 1.442695
    %v1426 = vpow.pop %v1425
    %v1427 = vadd.f32 %v1426, 1.0
    %v1428 = vrcp.pop %v1427
    %v1429 = vmul.f32 %v1427, %v1428
    %v1430 = vsub.f32 1.0, %v1429
    %v1431 = vmul.f32 %v1428, %v1430
    %v1432 = vadd.f32 %v1428, %v1431
    %vm1433 = vweird.f32 %v1427
    %vm1434 = vweird.f32 %v1428
    %vm1435 = vmor %vm1433, %vm1434
    %v1436 = vsel %vm1435, %v1428, %v1432
    %v1437 = vand.u32 2147483647, %v1427
    %vm1438 = vcmp.eq.f32.partialorder %v1437, 8.507059e+37
    %v1439 = vand.u32 %v1427, 2147483648
    %v1440 = vor.u32 1.1754944e-38, %v1439
    %v1441 = vsel %vm1438, %v1440, %v1436
    %v1442 = vmul.f32 1.0, %v1441
    %v1443 = vmul.f32 %v1422, %v1316
    %v1444 = vmul.f32 %v1403, %v1423
    %v1445 = vadd.f32 %v1443, %v1444
    %v1446 = vtanh.pop %v1445
    %v1447 = vmul.f32 %v1442, %v1446
    %s1448 = scalar_lea.vmem %s6, 48
    %1449 = vst [vmem:[%s1448] sm:$0xff] %v1447
    %s1450 = smul.u32 7, 4
    %s1451 = smul.addr %s1450, 8
    %s1452 = scalar_lea.vmem [#allocation4], %s1451
    %v1453 = vld [vmem:[%s1452] sm:$0xff]
    %v1454 = vld [vmem:[%s1452 + $0x8] sm:$0xff]
    %v1455 = vld [vmem:[%s1452 + $0x10] sm:$0xff]
    %v1456 = vld [vmem:[%s1452 + $0x18] sm:$0xff]
    %v1457 = vpack.c.bf16 %v1447, %v1447
    %1458 = vmatpush.bf16.msra.mxu0 %v520
    %1459 = vmatpush.bf16.msra.mxu0 %v516
    %1460 = vmatpush.bf16.msra.mxu0 %v512
    %1461 = vmatpush.bf16.msra.mxu0 %v508
    %1462 = vmatpush.bf16.msra.mxu0 %v504
    %1463 = vmatpush.bf16.msra.mxu0 %v500
    %1464 = vmatpush.bf16.msra.mxu0 %v496
    %1465 = vmatpush.bf16.msra.mxu0 %v492
    %1466 = vmatmul.bf16.gmra.mxu0 %v1457
    %v1467 = vpop.f32.mrf.mxu0
    %v1468 = vadd.f32 0.0, %v1467
    %v1469 = vpop.f32.mrf.mxu0
    %1470 = vdwg.mxu0
    %1471 = vmatpush.bf16.msra.mxu0 %v521
    %1472 = vmatpush.bf16.msra.mxu0 %v517
    %1473 = vmatpush.bf16.msra.mxu0 %v513
    %1474 = vmatpush.bf16.msra.mxu0 %v509
    %1475 = vmatpush.bf16.msra.mxu0 %v505
    %1476 = vmatpush.bf16.msra.mxu0 %v501
    %1477 = vmatpush.bf16.msra.mxu0 %v497
    %1478 = vmatpush.bf16.msra.mxu0 %v493
    %1479 = vmatmul.bf16.gmra.mxu0 %v1457
    %v1480 = vpop.f32.mrf.mxu0
    %v1481 = vadd.f32 0.0, %v1480
    %v1482 = vpop.f32.mrf.mxu0
    %1483 = vdwg.mxu0
    %1484 = vmatpush.bf16.msra.mxu0 %v522
    %1485 = vmatpush.bf16.msra.mxu0 %v518
    %1486 = vmatpush.bf16.msra.mxu0 %v514
    %1487 = vmatpush.bf16.msra.mxu0 %v510
    %1488 = vmatpush.bf16.msra.mxu0 %v506
    %1489 = vmatpush.bf16.msra.mxu0 %v502
    %1490 = vmatpush.bf16.msra.mxu0 %v498
    %1491 = vmatpush.bf16.msra.mxu0 %v494
    %1492 = vmatmul.bf16.gmra.mxu0 %v1457
    %v1493 = vpop.f32.mrf.mxu0
    %v1494 = vadd.f32 0.0, %v1493
    %v1495 = vpop.f32.mrf.mxu0
    %1496 = vdwg.mxu0
    %1497 = vmatpush.bf16.msra.mxu0 %v523
    %1498 = vmatpush.bf16.msra.mxu0 %v519
    %1499 = vmatpush.bf16.msra.mxu0 %v515
    %1500 = vmatpush.bf16.msra.mxu0 %v511
    %1501 = vmatpush.bf16.msra.mxu0 %v507
    %1502 = vmatpush.bf16.msra.mxu0 %v503
    %1503 = vmatpush.bf16.msra.mxu0 %v499
    %1504 = vmatpush.bf16.msra.mxu0 %v495
    %1505 = vmatmul.bf16.gmra.mxu0 %v1457
    %v1506 = vpop.f32.mrf.mxu0
    %v1507 = vadd.f32 0.0, %v1506
    %v1508 = vpop.f32.mrf.mxu0
    %1509 = vdwg.mxu0
    %v1510 = vadd.f32 %v1453, %v1468
    %v1511 = vadd.f32 %v1454, %v1481
    %v1512 = vadd.f32 %v1455, %v1494
    %v1513 = vadd.f32 %v1456, %v1507
    %v1514 = vxor.u32 %v1510, 2147483648
    %v1515 = vmul.f32 %v1514, 1.442695
    %v1516 = vpow.pop %v1515
    %v1517 = vadd.f32 %v1516, 1.0
    %v1518 = vrcp.pop %v1517
    %v1519 = vmul.f32 %v1517, %v1518
    %v1520 = vsub.f32 1.0, %v1519
    %v1521 = vmul.f32 %v1518, %v1520
    %v1522 = vadd.f32 %v1518, %v1521
    %vm1523 = vweird.f32 %v1517
    %vm1524 = vweird.f32 %v1518
    %vm1525 = vmor %vm1523, %vm1524
    %v1526 = vsel %vm1525, %v1518, %v1522
    %v1527 = vand.u32 2147483647, %v1517
    %vm1528 = vcmp.eq.f32.partialorder %v1527, 8.507059e+37
    %v1529 = vand.u32 %v1517, 2147483648
    %v1530 = vor.u32 1.1754944e-38, %v1529
    %v1531 = vsel %vm1528, %v1530, %v1526
    %v1532 = vmul.f32 1.0, %v1531
    %v1533 = vxor.u32 %v1511, 2147483648
    %v1534 = vmul.f32 %v1533, 1.442695
    %v1535 = vpow.pop %v1534
    %v1536 = vadd.f32 %v1535, 1.0
    %v1537 = vrcp.pop %v1536
    %v1538 = vmul.f32 %v1536, %v1537
    %v1539 = vsub.f32 1.0, %v1538
    %v1540 = vmul.f32 %v1537, %v1539
    %v1541 = vadd.f32 %v1537, %v1540
    %vm1542 = vweird.f32 %v1536
    %vm1543 = vweird.f32 %v1537
    %vm1544 = vmor %vm1542, %vm1543
    %v1545 = vsel %vm1544, %v1537, %v1541
    %v1546 = vand.u32 2147483647, %v1536
    %vm1547 = vcmp.eq.f32.partialorder %v1546, 8.507059e+37
    %v1548 = vand.u32 %v1536, 2147483648
    %v1549 = vor.u32 1.1754944e-38, %v1548
    %v1550 = vsel %vm1547, %v1549, %v1545
    %v1551 = vmul.f32 1.0, %v1550
    %v1552 = vtanh.pop %v1512
    %v1553 = vxor.u32 %v1513, 2147483648
    %v1554 = vmul.f32 %v1553, 1.442695
    %v1555 = vpow.pop %v1554
    %v1556 = vadd.f32 %v1555, 1.0
    %v1557 = vrcp.pop %v1556
    %v1558 = vmul.f32 %v1556, %v1557
    %v1559 = vsub.f32 1.0, %v1558
    %v1560 = vmul.f32 %v1557, %v1559
    %v1561 = vadd.f32 %v1557, %v1560
    %vm1562 = vweird.f32 %v1556
    %vm1563 = vweird.f32 %v1557
    %vm1564 = vmor %vm1562, %vm1563
    %v1565 = vsel %vm1564, %v1557, %v1561
    %v1566 = vand.u32 2147483647, %v1556
    %vm1567 = vcmp.eq.f32.partialorder %v1566, 8.507059e+37
    %v1568 = vand.u32 %v1556, 2147483648
    %v1569 = vor.u32 1.1754944e-38, %v1568
    %v1570 = vsel %vm1567, %v1569, %v1565
    %v1571 = vmul.f32 1.0, %v1570
    %v1572 = vmul.f32 %v1551, %v1445
    %v1573 = vmul.f32 %v1532, %v1552
    %v1574 = vadd.f32 %v1572, %v1573
    %v1575 = vtanh.pop %v1574
    %v1576 = vmul.f32 %v1571, %v1575
    %s1577 = scalar_lea.vmem %s6, 56
    %1578 = vst [vmem:[%s1577] sm:$0xff] %v1576
    %1579 = vst [vmem:[#allocation2] sm:$0xff] %v1576
    %1580 = vst [vmem:[#allocation3] sm:$0xff] %v1574
    // Predicated region
    $region54: #{_lstm_forward_impl.1} parent=1 // pred_check
      %p1581 = pneg %p115
    $region55: #{_lstm_forward_impl.1} parent=1 // pred_check_branch
      %1583 = sbr.rel (%p1581) target = $region57
    $region56: #{_lstm_forward_impl.1} parent=1 // pred_region
      %1584 = vst [vmem:[#allocation16] sm:$0xff] %v1574
    $region57: #{_lstm_forward_impl.1} parent=1 // pred_fallthru
      _
    // Predicated region
    $region58: #{_lstm_forward_impl.1} parent=1 // pred_check
      _
    $region59: #{_lstm_forward_impl.1} parent=1 // pred_check_branch
      %1586 = sbr.rel (0) target = $region61
    $region60: #{_lstm_forward_impl.1} parent=1 // pred_region
      _
    $region61: #{_lstm_forward_impl.1} parent=1 // pred_fallthru
      _
    // Predicated region
    $region62: #{_lstm_forward_impl.1} parent=1 // pred_check
      _
    $region63: #{_lstm_forward_impl.1} parent=1 // pred_check_branch
      %1588 = sbr.rel (0) target = $region65
    $region64: #{_lstm_forward_impl.1} parent=1 // pred_region
      %1590 = vsyncadd [#allocation7], 0
      %s1592 = sshll.u32 [#allocation16], 4
      %s1593 = int_to_ptr.vmem [resolvable:$true] %s1592
      %s1594 = sshll.u32 %s7, 4
      %s1595 = int_to_ptr.hbm [resolvable:$true] %s1594
      %1597 = dma.vmem_to_hbm [thread:$0]  %s1593, 128, %s1595, [#allocation7]
    $region65: #{_lstm_forward_impl.1} parent=1 // pred_fallthru
      _
    // Predicated region
    $region66: #{_lstm_forward_impl.1} parent=1 // pred_check
      _
    $region67: #{_lstm_forward_impl.1} parent=1 // pred_check_branch
      %1599 = sbr.rel (0) target = $region69
    $region68: #{_lstm_forward_impl.1} parent=1 // pred_region
      _
    $region69: #{_lstm_forward_impl.1} parent=1 // pred_fallthru
      _
    // Predicated region
    $region70: #{_lstm_forward_impl.1} parent=1 // pred_check
      _
    $region71: #{_lstm_forward_impl.1} parent=1 // pred_check_branch
      %1601 = sbr.rel (0) target = $region73
    $region72: #{_lstm_forward_impl.1} parent=1 // pred_region
      %1603 = dma.done [#allocation7], 128
    $region73: #{_lstm_forward_impl.1} parent=1 // pred_fallthru
      _
    %1604 = vsyncpa [#allocation6], 1
    %1605 = vsyncpa [#allocation9], 1
    %1606 = vsyncpa [#allocation12], 1
    %1607 = vsyncpa [#allocation15], 1
    %1608 = vsyncpa [#allocation7], 1

</llo_original>
